<compile_context>
chip_gen: v5e
topology: v5e:2x2
jax: 0.10.0
libtpu: 0.0.40
codegen_flags: <defaults>
</compile_context>

<pallas_src>
import functools

import jax
import jax.numpy as jnp
from jax.experimental import pallas as pl
from jax.experimental.pallas import tpu as pltpu

# Layer dimensions of the autoencoder (fc1 .. fc10).
DIMS = [320, 256, 196, 136, 76, 14, 76, 136, 196, 256, 320]
NUM_LAYERS = len(DIMS) - 1  # 10


def _round_up(n, m):
    return ((n + m - 1) // m) * m


# Per-layer padded feature widths: exact 320 at the I/O boundary (320 is a
# multiple of 8 so it is a legal sublane/full-dim lane width), hidden dims
# rounded up to 128 lanes.
PDIMS = [DIMS[0]] + [_round_up(d, 128) for d in DIMS[1:-1]] + [DIMS[-1]]
# -> [320, 256, 256, 256, 128, 128, 128, 256, 256, 256, 320]


def _autoencoder_kernel(*refs):
    """refs = (x_ref, w0, b0, w1, b1, ..., w9, b9, out_ref).

    x_ref:   (TB, 320) f32
    w_l:     (PDIMS[l], PDIMS[l+1]) bf16, zero-padded outside the real rows/cols
    b_l:     (1, PDIMS[l+1]) f32, zero-padded
    out_ref: (TB, 320) f32
    """
    x_ref = refs[0]
    out_ref = refs[-1]
    params = refs[1:-1]

    h = x_ref[...].astype(jnp.bfloat16)                    # bf16 activations
    for layer in range(NUM_LAYERS):                        # fully unrolled, static
        w = params[2 * layer][...]                         # (K_pad, N_pad) bf16
        b = params[2 * layer + 1][...]                     # (1, N_pad)     f32
        y = jnp.dot(h, w, preferred_element_type=jnp.float32) + b
        if layer != NUM_LAYERS - 1:                        # ReLU on all but last layer
            h = jnp.maximum(y, 0.0).astype(jnp.bfloat16)
        else:
            out_ref[...] = y.astype(out_ref.dtype)         # width 320 already


def _choose_tile_b(batch, tb):
    """Pick a sublane-legal batch tile; split mid-size batches into >=2 steps."""
    tb = max(8, _round_up(tb, 8))
    if batch > 2 * tb:
        tile_b = tb
    else:
        # Give the "parallel" grid axis >= 2 steps when possible (v7x megacore),
        # while keeping tiny batches at a single minimal tile.
        tile_b = max(8, _round_up((batch + 1) // 2, 8))
    b_pad = _round_up(batch, tile_b)
    return tile_b, b_pad


@functools.partial(jax.jit, static_argnames=("tb",))
def autoencoder_forward(x, weights, biases, *, tb=256):
    """x: [B, 320] f32. weights/biases: tuples of per-layer padded params."""
    B, F = x.shape
    assert F == DIMS[0]

    tile_b, b_pad = _choose_tile_b(B, tb)

    # Pad the batch dim only (no feature padding, no extra HBM round-trip).
    if b_pad != B:
        x_p = jnp.zeros((b_pad, F), x.dtype).at[:B].set(x)
    else:
        x_p = x

    in_specs = [pl.BlockSpec((tile_b, F), lambda i: (i, 0))]
    args = [x_p]
    for layer in range(NUM_LAYERS):
        w = weights[layer]
        b = biases[layer]
        # Whole-array blocks with constant index maps: DMA'd once, VMEM-resident.
        in_specs.append(pl.BlockSpec(w.shape, lambda i: (0, 0)))
        in_specs.append(pl.BlockSpec(b.shape, lambda i: (0, 0)))
        args.extend([w, b])

    out = pl.pallas_call(
        _autoencoder_kernel,
        out_shape=jax.ShapeDtypeStruct((b_pad, DIMS[-1]), jnp.float32),
        grid_spec=pltpu.PrefetchScalarGridSpec(
            num_scalar_prefetch=0,
            grid=(b_pad // tile_b,),
            in_specs=in_specs,
            out_specs=pl.BlockSpec((tile_b, DIMS[-1]), lambda i: (i, 0)),
        ),
        compiler_params=pltpu.CompilerParams(
            dimension_semantics=("parallel",),  # megacore sharding of batch tiles
        ),
    )(*args)

    return out[:B]


def init_params(key):
    """nn.Linear-style U(-1/sqrt(fan_in), 1/sqrt(fan_in)) init, tightly packed.

    Returns (weights, biases): per-layer arrays
      weights[l]: [PDIMS[l], PDIMS[l+1]] bf16, stored as [in, out] (transpose of
                  PyTorch's [out, in]) so the kernel computes y = x @ W + b,
                  zero outside the real [DIMS[l], DIMS[l+1]] block.
      biases[l]:  [1, PDIMS[l+1]] f32, zero beyond DIMS[l+1].
    """
    weights, biases = [], []
    for i in range(NUM_LAYERS):
        fan_in, fan_out = DIMS[i], DIMS[i + 1]
        kp_in, kp_out = PDIMS[i], PDIMS[i + 1]
        key, kw, kb = jax.random.split(key, 3)
        bound = 1.0 / (fan_in ** 0.5)
        w = jax.random.uniform(kw, (fan_in, fan_out), jnp.float32, -bound, bound)
        b = jax.random.uniform(kb, (fan_out,), jnp.float32, -bound, bound)
        w_pad = jnp.zeros((kp_in, kp_out), jnp.float32).at[:fan_in, :fan_out].set(w)
        b_pad = jnp.zeros((1, kp_out), jnp.float32).at[0, :fan_out].set(b)
        weights.append(w_pad.astype(jnp.bfloat16))
        biases.append(b_pad)
    return tuple(weights), tuple(biases)


def reference_forward(x, weights, biases):
    """Plain-JAX reference using the identical bf16-matmul / f32-accumulate recipe."""
    h = x.astype(jnp.bfloat16)
    for layer in range(NUM_LAYERS):
        y = jnp.dot(h, weights[layer], preferred_element_type=jnp.float32) + biases[layer]
        if layer != NUM_LAYERS - 1:
            h = jnp.maximum(y, 0.0).astype(jnp.bfloat16)
        else:
            h = y
    return h  # already width 320


if __name__ == "__main__":
    key = jax.random.PRNGKey(0)
    key, kx = jax.random.split(key)

    B = 8
    x = jax.random.normal(kx, (B, DIMS[0]), jnp.float32)
    weights, biases = init_params(key)

    out = autoencoder_forward(x, weights, biases)
    out = jax.block_until_ready(out)

    ref = reference_forward(x, weights, biases)
    assert out.shape == (B, DIMS[-1]), out.shape
    assert jnp.allclose(out, ref, atol=5e-3, rtol=5e-3), "mismatch vs reference"

    print("KERNEL_OK")
</pallas_src>

<mosaic_0001>
module attributes {stable_mosaic.version = 11 : i64} {
  func.func @_autoencoder_kernel(%arg0: i32, %arg1: memref<8x320xf32, #tpu.memory_space<vmem>>, %arg2: memref<320x256xbf16, #tpu.memory_space<vmem>>, %arg3: memref<1x256xf32, #tpu.memory_space<vmem>>, %arg4: memref<256x256xbf16, #tpu.memory_space<vmem>>, %arg5: memref<1x256xf32, #tpu.memory_space<vmem>>, %arg6: memref<256x256xbf16, #tpu.memory_space<vmem>>, %arg7: memref<1x256xf32, #tpu.memory_space<vmem>>, %arg8: memref<256x128xbf16, #tpu.memory_space<vmem>>, %arg9: memref<1x128xf32, #tpu.memory_space<vmem>>, %arg10: memref<128x128xbf16, #tpu.memory_space<vmem>>, %arg11: memref<1x128xf32, #tpu.memory_space<vmem>>, %arg12: memref<128x128xbf16, #tpu.memory_space<vmem>>, %arg13: memref<1x128xf32, #tpu.memory_space<vmem>>, %arg14: memref<128x256xbf16, #tpu.memory_space<vmem>>, %arg15: memref<1x256xf32, #tpu.memory_space<vmem>>, %arg16: memref<256x256xbf16, #tpu.memory_space<vmem>>, %arg17: memref<1x256xf32, #tpu.memory_space<vmem>>, %arg18: memref<256x256xbf16, #tpu.memory_space<vmem>>, %arg19: memref<1x256xf32, #tpu.memory_space<vmem>>, %arg20: memref<256x320xbf16, #tpu.memory_space<vmem>>, %arg21: memref<1x320xf32, #tpu.memory_space<vmem>>, %arg22: memref<8x320xf32, #tpu.memory_space<vmem>>) attributes {dimension_semantics = [#tpu.dimension_semantics<parallel>], iteration_bounds = array<i64: 1>, scalar_prefetch = 0 : i64, scratch_operands = 0 : i64, tpu.core_type = #tpu.core_type<tc>, window_params = [{transform_indices = @transform_0, window_bounds = array<i64: 8, 320>}, {pipeline_mode = #tpu.pipeline_mode<synchronous>, transform_indices = @transform_1, window_bounds = array<i64: 320, 256>}, {pipeline_mode = #tpu.pipeline_mode<synchronous>, transform_indices = @transform_2, window_bounds = array<i64: 1, 256>}, {pipeline_mode = #tpu.pipeline_mode<synchronous>, transform_indices = @transform_3, window_bounds = array<i64: 256, 256>}, {pipeline_mode = #tpu.pipeline_mode<synchronous>, transform_indices = @transform_4, window_bounds = array<i64: 1, 256>}, {pipeline_mode = #tpu.pipeline_mode<synchronous>, transform_indices = @transform_5, window_bounds = array<i64: 256, 256>}, {pipeline_mode = #tpu.pipeline_mode<synchronous>, transform_indices = @transform_6, window_bounds = array<i64: 1, 256>}, {pipeline_mode = #tpu.pipeline_mode<synchronous>, transform_indices = @transform_7, window_bounds = array<i64: 256, 128>}, {pipeline_mode = #tpu.pipeline_mode<synchronous>, transform_indices = @transform_8, window_bounds = array<i64: 1, 128>}, {pipeline_mode = #tpu.pipeline_mode<synchronous>, transform_indices = @transform_9, window_bounds = array<i64: 128, 128>}, {pipeline_mode = #tpu.pipeline_mode<synchronous>, transform_indices = @transform_10, window_bounds = array<i64: 1, 128>}, {pipeline_mode = #tpu.pipeline_mode<synchronous>, transform_indices = @transform_11, window_bounds = array<i64: 128, 128>}, {pipeline_mode = #tpu.pipeline_mode<synchronous>, transform_indices = @transform_12, window_bounds = array<i64: 1, 128>}, {pipeline_mode = #tpu.pipeline_mode<synchronous>, transform_indices = @transform_13, window_bounds = array<i64: 128, 256>}, {pipeline_mode = #tpu.pipeline_mode<synchronous>, transform_indices = @transform_14, window_bounds = array<i64: 1, 256>}, {pipeline_mode = #tpu.pipeline_mode<synchronous>, transform_indices = @transform_15, window_bounds = array<i64: 256, 256>}, {pipeline_mode = #tpu.pipeline_mode<synchronous>, transform_indices = @transform_16, window_bounds = array<i64: 1, 256>}, {pipeline_mode = #tpu.pipeline_mode<synchronous>, transform_indices = @transform_17, window_bounds = array<i64: 256, 256>}, {pipeline_mode = #tpu.pipeline_mode<synchronous>, transform_indices = @transform_18, window_bounds = array<i64: 1, 256>}, {pipeline_mode = #tpu.pipeline_mode<synchronous>, transform_indices = @transform_19, window_bounds = array<i64: 256, 320>}, {pipeline_mode = #tpu.pipeline_mode<synchronous>, transform_indices = @transform_20, window_bounds = array<i64: 1, 320>}, {transform_indices = @transform_21, window_bounds = array<i64: 8, 320>}]} {
    %c0 = arith.constant 0 : index
    %c0_0 = arith.constant 0 : index
    %0 = vector.load %arg1[%c0, %c0_0] : memref<8x320xf32, #tpu.memory_space<vmem>>, vector<8x320xf32>
    %1 = arith.truncf %0 : vector<8x320xf32> to vector<8x320xbf16>
    %c0_1 = arith.constant 0 : index
    %c0_2 = arith.constant 0 : index
    %2 = vector.load %arg2[%c0_1, %c0_2] : memref<320x256xbf16, #tpu.memory_space<vmem>>, vector<320x256xbf16>
    %c0_3 = arith.constant 0 : index
    %c0_4 = arith.constant 0 : index
    %3 = vector.load %arg3[%c0_3, %c0_4] : memref<1x256xf32, #tpu.memory_space<vmem>>, vector<1x256xf32>
    %cst = arith.constant dense<0.000000e+00> : vector<8x256xf32>
    %4 = tpu.matmul %1, %2, %cst {dimension_numbers = #tpu.dot_dimension_numbers<[1], [0], [0], [1], [0, 0, 1, 1], [], []>} : vector<8x320xbf16>, vector<320x256xbf16>, vector<8x256xf32> -> vector<8x256xf32>
    %5 = vector.broadcast %3 : vector<1x256xf32> to vector<8x256xf32>
    %6 = arith.addf %4, %5 : vector<8x256xf32>
    %cst_5 = arith.constant 0.000000e+00 : f32
    %7 = vector.broadcast %cst_5 : f32 to vector<8x256xf32>
    %8 = arith.maximumf %6, %7 : vector<8x256xf32>
    %9 = arith.truncf %8 : vector<8x256xf32> to vector<8x256xbf16>
    %c0_6 = arith.constant 0 : index
    %c0_7 = arith.constant 0 : index
    %10 = vector.load %arg4[%c0_6, %c0_7] : memref<256x256xbf16, #tpu.memory_space<vmem>>, vector<256x256xbf16>
    %c0_8 = arith.constant 0 : index
    %c0_9 = arith.constant 0 : index
    %11 = vector.load %arg5[%c0_8, %c0_9] : memref<1x256xf32, #tpu.memory_space<vmem>>, vector<1x256xf32>
    %cst_10 = arith.constant dense<0.000000e+00> : vector<8x256xf32>
    %12 = tpu.matmul %9, %10, %cst_10 {dimension_numbers = #tpu.dot_dimension_numbers<[1], [0], [0], [1], [0, 0, 1, 1], [], []>} : vector<8x256xbf16>, vector<256x256xbf16>, vector<8x256xf32> -> vector<8x256xf32>
    %13 = vector.broadcast %11 : vector<1x256xf32> to vector<8x256xf32>
    %14 = arith.addf %12, %13 : vector<8x256xf32>
    %cst_11 = arith.constant 0.000000e+00 : f32
    %15 = vector.broadcast %cst_11 : f32 to vector<8x256xf32>
    %16 = arith.maximumf %14, %15 : vector<8x256xf32>
    %17 = arith.truncf %16 : vector<8x256xf32> to vector<8x256xbf16>
    %c0_12 = arith.constant 0 : index
    %c0_13 = arith.constant 0 : index
    %18 = vector.load %arg6[%c0_12, %c0_13] : memref<256x256xbf16, #tpu.memory_space<vmem>>, vector<256x256xbf16>
    %c0_14 = arith.constant 0 : index
    %c0_15 = arith.constant 0 : index
    %19 = vector.load %arg7[%c0_14, %c0_15] : memref<1x256xf32, #tpu.memory_space<vmem>>, vector<1x256xf32>
    %cst_16 = arith.constant dense<0.000000e+00> : vector<8x256xf32>
    %20 = tpu.matmul %17, %18, %cst_16 {dimension_numbers = #tpu.dot_dimension_numbers<[1], [0], [0], [1], [0, 0, 1, 1], [], []>} : vector<8x256xbf16>, vector<256x256xbf16>, vector<8x256xf32> -> vector<8x256xf32>
    %21 = vector.broadcast %19 : vector<1x256xf32> to vector<8x256xf32>
    %22 = arith.addf %20, %21 : vector<8x256xf32>
    %cst_17 = arith.constant 0.000000e+00 : f32
    %23 = vector.broadcast %cst_17 : f32 to vector<8x256xf32>
    %24 = arith.maximumf %22, %23 : vector<8x256xf32>
    %25 = arith.truncf %24 : vector<8x256xf32> to vector<8x256xbf16>
    %c0_18 = arith.constant 0 : index
    %c0_19 = arith.constant 0 : index
    %26 = vector.load %arg8[%c0_18, %c0_19] : memref<256x128xbf16, #tpu.memory_space<vmem>>, vector<256x128xbf16>
    %c0_20 = arith.constant 0 : index
    %c0_21 = arith.constant 0 : index
    %27 = vector.load %arg9[%c0_20, %c0_21] : memref<1x128xf32, #tpu.memory_space<vmem>>, vector<1x128xf32>
    %cst_22 = arith.constant dense<0.000000e+00> : vector<8x128xf32>
    %28 = tpu.matmul %25, %26, %cst_22 {dimension_numbers = #tpu.dot_dimension_numbers<[1], [0], [0], [1], [0, 0, 1, 1], [], []>} : vector<8x256xbf16>, vector<256x128xbf16>, vector<8x128xf32> -> vector<8x128xf32>
    %29 = vector.broadcast %27 : vector<1x128xf32> to vector<8x128xf32>
    %30 = arith.addf %28, %29 : vector<8x128xf32>
    %cst_23 = arith.constant 0.000000e+00 : f32
    %31 = vector.broadcast %cst_23 : f32 to vector<8x128xf32>
    %32 = arith.maximumf %30, %31 : vector<8x128xf32>
    %33 = arith.truncf %32 : vector<8x128xf32> to vector<8x128xbf16>
    %c0_24 = arith.constant 0 : index
    %c0_25 = arith.constant 0 : index
    %34 = vector.load %arg10[%c0_24, %c0_25] : memref<128x128xbf16, #tpu.memory_space<vmem>>, vector<128x128xbf16>
    %c0_26 = arith.constant 0 : index
    %c0_27 = arith.constant 0 : index
    %35 = vector.load %arg11[%c0_26, %c0_27] : memref<1x128xf32, #tpu.memory_space<vmem>>, vector<1x128xf32>
    %cst_28 = arith.constant dense<0.000000e+00> : vector<8x128xf32>
    %36 = tpu.matmul %33, %34, %cst_28 {dimension_numbers = #tpu.dot_dimension_numbers<[1], [0], [0], [1], [0, 0, 1, 1], [], []>} : vector<8x128xbf16>, vector<128x128xbf16>, vector<8x128xf32> -> vector<8x128xf32>
    %37 = vector.broadcast %35 : vector<1x128xf32> to vector<8x128xf32>
    %38 = arith.addf %36, %37 : vector<8x128xf32>
    %cst_29 = arith.constant 0.000000e+00 : f32
    %39 = vector.broadcast %cst_29 : f32 to vector<8x128xf32>
    %40 = arith.maximumf %38, %39 : vector<8x128xf32>
    %41 = arith.truncf %40 : vector<8x128xf32> to vector<8x128xbf16>
    %c0_30 = arith.constant 0 : index
    %c0_31 = arith.constant 0 : index
    %42 = vector.load %arg12[%c0_30, %c0_31] : memref<128x128xbf16, #tpu.memory_space<vmem>>, vector<128x128xbf16>
    %c0_32 = arith.constant 0 : index
    %c0_33 = arith.constant 0 : index
    %43 = vector.load %arg13[%c0_32, %c0_33] : memref<1x128xf32, #tpu.memory_space<vmem>>, vector<1x128xf32>
    %cst_34 = arith.constant dense<0.000000e+00> : vector<8x128xf32>
    %44 = tpu.matmul %41, %42, %cst_34 {dimension_numbers = #tpu.dot_dimension_numbers<[1], [0], [0], [1], [0, 0, 1, 1], [], []>} : vector<8x128xbf16>, vector<128x128xbf16>, vector<8x128xf32> -> vector<8x128xf32>
    %45 = vector.broadcast %43 : vector<1x128xf32> to vector<8x128xf32>
    %46 = arith.addf %44, %45 : vector<8x128xf32>
    %cst_35 = arith.constant 0.000000e+00 : f32
    %47 = vector.broadcast %cst_35 : f32 to vector<8x128xf32>
    %48 = arith.maximumf %46, %47 : vector<8x128xf32>
    %49 = arith.truncf %48 : vector<8x128xf32> to vector<8x128xbf16>
    %c0_36 = arith.constant 0 : index
    %c0_37 = arith.constant 0 : index
    %50 = vector.load %arg14[%c0_36, %c0_37] : memref<128x256xbf16, #tpu.memory_space<vmem>>, vector<128x256xbf16>
    %c0_38 = arith.constant 0 : index
    %c0_39 = arith.constant 0 : index
    %51 = vector.load %arg15[%c0_38, %c0_39] : memref<1x256xf32, #tpu.memory_space<vmem>>, vector<1x256xf32>
    %cst_40 = arith.constant dense<0.000000e+00> : vector<8x256xf32>
    %52 = tpu.matmul %49, %50, %cst_40 {dimension_numbers = #tpu.dot_dimension_numbers<[1], [0], [0], [1], [0, 0, 1, 1], [], []>} : vector<8x128xbf16>, vector<128x256xbf16>, vector<8x256xf32> -> vector<8x256xf32>
    %53 = vector.broadcast %51 : vector<1x256xf32> to vector<8x256xf32>
    %54 = arith.addf %52, %53 : vector<8x256xf32>
    %cst_41 = arith.constant 0.000000e+00 : f32
    %55 = vector.broadcast %cst_41 : f32 to vector<8x256xf32>
    %56 = arith.maximumf %54, %55 : vector<8x256xf32>
    %57 = arith.truncf %56 : vector<8x256xf32> to vector<8x256xbf16>
    %c0_42 = arith.constant 0 : index
    %c0_43 = arith.constant 0 : index
    %58 = vector.load %arg16[%c0_42, %c0_43] : memref<256x256xbf16, #tpu.memory_space<vmem>>, vector<256x256xbf16>
    %c0_44 = arith.constant 0 : index
    %c0_45 = arith.constant 0 : index
    %59 = vector.load %arg17[%c0_44, %c0_45] : memref<1x256xf32, #tpu.memory_space<vmem>>, vector<1x256xf32>
    %cst_46 = arith.constant dense<0.000000e+00> : vector<8x256xf32>
    %60 = tpu.matmul %57, %58, %cst_46 {dimension_numbers = #tpu.dot_dimension_numbers<[1], [0], [0], [1], [0, 0, 1, 1], [], []>} : vector<8x256xbf16>, vector<256x256xbf16>, vector<8x256xf32> -> vector<8x256xf32>
    %61 = vector.broadcast %59 : vector<1x256xf32> to vector<8x256xf32>
    %62 = arith.addf %60, %61 : vector<8x256xf32>
    %cst_47 = arith.constant 0.000000e+00 : f32
    %63 = vector.broadcast %cst_47 : f32 to vector<8x256xf32>
    %64 = arith.maximumf %62, %63 : vector<8x256xf32>
    %65 = arith.truncf %64 : vector<8x256xf32> to vector<8x256xbf16>
    %c0_48 = arith.constant 0 : index
    %c0_49 = arith.constant 0 : index
    %66 = vector.load %arg18[%c0_48, %c0_49] : memref<256x256xbf16, #tpu.memory_space<vmem>>, vector<256x256xbf16>
    %c0_50 = arith.constant 0 : index
    %c0_51 = arith.constant 0 : index
    %67 = vector.load %arg19[%c0_50, %c0_51] : memref<1x256xf32, #tpu.memory_space<vmem>>, vector<1x256xf32>
    %cst_52 = arith.constant dense<0.000000e+00> : vector<8x256xf32>
    %68 = tpu.matmul %65, %66, %cst_52 {dimension_numbers = #tpu.dot_dimension_numbers<[1], [0], [0], [1], [0, 0, 1, 1], [], []>} : vector<8x256xbf16>, vector<256x256xbf16>, vector<8x256xf32> -> vector<8x256xf32>
    %69 = vector.broadcast %67 : vector<1x256xf32> to vector<8x256xf32>
    %70 = arith.addf %68, %69 : vector<8x256xf32>
    %cst_53 = arith.constant 0.000000e+00 : f32
    %71 = vector.broadcast %cst_53 : f32 to vector<8x256xf32>
    %72 = arith.maximumf %70, %71 : vector<8x256xf32>
    %73 = arith.truncf %72 : vector<8x256xf32> to vector<8x256xbf16>
    %c0_54 = arith.constant 0 : index
    %c0_55 = arith.constant 0 : index
    %74 = vector.load %arg20[%c0_54, %c0_55] : memref<256x320xbf16, #tpu.memory_space<vmem>>, vector<256x320xbf16>
    %c0_56 = arith.constant 0 : index
    %c0_57 = arith.constant 0 : index
    %75 = vector.load %arg21[%c0_56, %c0_57] : memref<1x320xf32, #tpu.memory_space<vmem>>, vector<1x320xf32>
    %cst_58 = arith.constant dense<0.000000e+00> : vector<8x320xf32>
    %76 = tpu.matmul %73, %74, %cst_58 {dimension_numbers = #tpu.dot_dimension_numbers<[1], [0], [0], [1], [0, 0, 1, 1], [], []>} : vector<8x256xbf16>, vector<256x320xbf16>, vector<8x320xf32> -> vector<8x320xf32>
    %77 = vector.broadcast %75 : vector<1x320xf32> to vector<8x320xf32>
    %78 = arith.addf %76, %77 : vector<8x320xf32>
    %c0_59 = arith.constant 0 : index
    %c0_60 = arith.constant 0 : index
    %79 = vector.load %arg22[%c0_59, %c0_60] : memref<8x320xf32, #tpu.memory_space<vmem>>, vector<8x320xf32>
    tpu.vector_store %arg22[%c0_59, %c0_60], %78 {strides = array<i32>} : memref<8x320xf32, #tpu.memory_space<vmem>>, vector<8x320xf32>,
    return
  }
  func.func @transform_0(%arg0: i32) -> (i32, i32) {
    %c0_i32 = arith.constant 0 : i32
    %c0_i32_0 = arith.constant 0 : i32
    return %arg0, %c0_i32 : i32, i32
  }
  func.func @transform_1(%arg0: i32) -> (i32, i32) {
    %c0_i32 = arith.constant 0 : i32
    %c0_i32_0 = arith.constant 0 : i32
    %c0_i32_1 = arith.constant 0 : i32
    return %c0_i32, %c0_i32_0 : i32, i32
  }
  func.func @transform_2(%arg0: i32) -> (i32, i32) {
    %c0_i32 = arith.constant 0 : i32
    %c0_i32_0 = arith.constant 0 : i32
    %c0_i32_1 = arith.constant 0 : i32
    return %c0_i32, %c0_i32_0 : i32, i32
  }
  func.func @transform_3(%arg0: i32) -> (i32, i32) {
    %c0_i32 = arith.constant 0 : i32
    %c0_i32_0 = arith.constant 0 : i32
    %c0_i32_1 = arith.constant 0 : i32
    return %c0_i32, %c0_i32_0 : i32, i32
  }
  func.func @transform_4(%arg0: i32) -> (i32, i32) {
    %c0_i32 = arith.constant 0 : i32
    %c0_i32_0 = arith.constant 0 : i32
    %c0_i32_1 = arith.constant 0 : i32
    return %c0_i32, %c0_i32_0 : i32, i32
  }
  func.func @transform_5(%arg0: i32) -> (i32, i32) {
    %c0_i32 = arith.constant 0 : i32
    %c0_i32_0 = arith.constant 0 : i32
    %c0_i32_1 = arith.constant 0 : i32
    return %c0_i32, %c0_i32_0 : i32, i32
  }
  func.func @transform_6(%arg0: i32) -> (i32, i32) {
    %c0_i32 = arith.constant 0 : i32
    %c0_i32_0 = arith.constant 0 : i32
    %c0_i32_1 = arith.constant 0 : i32
    return %c0_i32, %c0_i32_0 : i32, i32
  }
  func.func @transform_7(%arg0: i32) -> (i32, i32) {
    %c0_i32 = arith.constant 0 : i32
    %c0_i32_0 = arith.constant 0 : i32
    %c0_i32_1 = arith.constant 0 : i32
    return %c0_i32, %c0_i32_0 : i32, i32
  }
  func.func @transform_8(%arg0: i32) -> (i32, i32) {
    %c0_i32 = arith.constant 0 : i32
    %c0_i32_0 = arith.constant 0 : i32
    %c0_i32_1 = arith.constant 0 : i32
    return %c0_i32, %c0_i32_0 : i32, i32
  }
  func.func @transform_9(%arg0: i32) -> (i32, i32) {
    %c0_i32 = arith.constant 0 : i32
    %c0_i32_0 = arith.constant 0 : i32
    %c0_i32_1 = arith.constant 0 : i32
    return %c0_i32, %c0_i32_0 : i32, i32
  }
  func.func @transform_10(%arg0: i32) -> (i32, i32) {
    %c0_i32 = arith.constant 0 : i32
    %c0_i32_0 = arith.constant 0 : i32
    %c0_i32_1 = arith.constant 0 : i32
    return %c0_i32, %c0_i32_0 : i32, i32
  }
  func.func @transform_11(%arg0: i32) -> (i32, i32) {
    %c0_i32 = arith.constant 0 : i32
    %c0_i32_0 = arith.constant 0 : i32
    %c0_i32_1 = arith.constant 0 : i32
    return %c0_i32, %c0_i32_0 : i32, i32
  }
  func.func @transform_12(%arg0: i32) -> (i32, i32) {
    %c0_i32 = arith.constant 0 : i32
    %c0_i32_0 = arith.constant 0 : i32
    %c0_i32_1 = arith.constant 0 : i32
    return %c0_i32, %c0_i32_0 : i32, i32
  }
  func.func @transform_13(%arg0: i32) -> (i32, i32) {
    %c0_i32 = arith.constant 0 : i32
    %c0_i32_0 = arith.constant 0 : i32
    %c0_i32_1 = arith.constant 0 : i32
    return %c0_i32, %c0_i32_0 : i32, i32
  }
  func.func @transform_14(%arg0: i32) -> (i32, i32) {
    %c0_i32 = arith.constant 0 : i32
    %c0_i32_0 = arith.constant 0 : i32
    %c0_i32_1 = arith.constant 0 : i32
    return %c0_i32, %c0_i32_0 : i32, i32
  }
  func.func @transform_15(%arg0: i32) -> (i32, i32) {
    %c0_i32 = arith.constant 0 : i32
    %c0_i32_0 = arith.constant 0 : i32
    %c0_i32_1 = arith.constant 0 : i32
    return %c0_i32, %c0_i32_0 : i32, i32
  }
  func.func @transform_16(%arg0: i32) -> (i32, i32) {
    %c0_i32 = arith.constant 0 : i32
    %c0_i32_0 = arith.constant 0 : i32
    %c0_i32_1 = arith.constant 0 : i32
    return %c0_i32, %c0_i32_0 : i32, i32
  }
  func.func @transform_17(%arg0: i32) -> (i32, i32) {
    %c0_i32 = arith.constant 0 : i32
    %c0_i32_0 = arith.constant 0 : i32
    %c0_i32_1 = arith.constant 0 : i32
    return %c0_i32, %c0_i32_0 : i32, i32
  }
  func.func @transform_18(%arg0: i32) -> (i32, i32) {
    %c0_i32 = arith.constant 0 : i32
    %c0_i32_0 = arith.constant 0 : i32
    %c0_i32_1 = arith.constant 0 : i32
    return %c0_i32, %c0_i32_0 : i32, i32
  }
  func.func @transform_19(%arg0: i32) -> (i32, i32) {
    %c0_i32 = arith.constant 0 : i32
    %c0_i32_0 = arith.constant 0 : i32
    %c0_i32_1 = arith.constant 0 : i32
    return %c0_i32, %c0_i32_0 : i32, i32
  }
  func.func @transform_20(%arg0: i32) -> (i32, i32) {
    %c0_i32 = arith.constant 0 : i32
    %c0_i32_0 = arith.constant 0 : i32
    %c0_i32_1 = arith.constant 0 : i32
    return %c0_i32, %c0_i32_0 : i32, i32
  }
  func.func @transform_21(%arg0: i32) -> (i32, i32) {
    %c0_i32 = arith.constant 0 : i32
    %c0_i32_0 = arith.constant 0 : i32
    return %arg0, %c0_i32 : i32, i32
  }
}

</mosaic_0001>

<llo_original>
// kernel: autoencoder_forward.1
$region0: #{autoencoder_forward.1}
  #allocation0 [shape = 'u32[]', space=smem, size = 0x4, offset = 0x4, fixed_abs, tag = 'smem constant byte address 0x4 - core index']
  #allocation1 [shape = 'u32[72,128]{1,0:T(1,128)}', space=vmem, size = 0x9000, scoped, tag = 'internal scratch']
  %s0 = inlined_call_operand.hbm [shape: f32[8,320], index: 0, kind: input, shape index: {}]
  %s1 = inlined_call_operand.vmem [shape: bf16[320,256], index: 1, kind: input, shape index: {}]
  %s2 = inlined_call_operand.vmem [shape: f32[1,256], index: 2, kind: input, shape index: {}]
  %s3 = inlined_call_operand.vmem [shape: bf16[256,256], index: 3, kind: input, shape index: {}]
  %s4 = inlined_call_operand.vmem [shape: f32[1,256], index: 4, kind: input, shape index: {}]
  %s5 = inlined_call_operand.hbm [shape: bf16[256,256], index: 5, kind: input, shape index: {}]
  %s6 = inlined_call_operand.hbm [shape: f32[1,256], index: 6, kind: input, shape index: {}]
  %s7 = inlined_call_operand.vmem [shape: bf16[256,128], index: 7, kind: input, shape index: {}]
  %s8 = inlined_call_operand.hbm [shape: f32[1,128], index: 8, kind: input, shape index: {}]
  %s9 = inlined_call_operand.hbm [shape: bf16[128,128], index: 9, kind: input, shape index: {}]
  %s10 = inlined_call_operand.hbm [shape: f32[1,128], index: 10, kind: input, shape index: {}]
  %s11 = inlined_call_operand.hbm [shape: bf16[128,128], index: 11, kind: input, shape index: {}]
  %s12 = inlined_call_operand.vmem [shape: f32[1,128], index: 12, kind: input, shape index: {}]
  %s13 = inlined_call_operand.hbm [shape: bf16[128,256], index: 13, kind: input, shape index: {}]
  %s14 = inlined_call_operand.vmem [shape: f32[1,256], index: 14, kind: input, shape index: {}]
  %s15 = inlined_call_operand.hbm [shape: bf16[256,256], index: 15, kind: input, shape index: {}]
  %s16 = inlined_call_operand.vmem [shape: f32[1,256], index: 16, kind: input, shape index: {}]
  %s17 = inlined_call_operand.hbm [shape: bf16[256,256], index: 17, kind: input, shape index: {}]
  %s18 = inlined_call_operand.vmem [shape: f32[1,256], index: 18, kind: input, shape index: {}]
  %s19 = inlined_call_operand.vmem [shape: bf16[256,320], index: 19, kind: input, shape index: {}]
  %s20 = inlined_call_operand.vmem [shape: f32[1,320], index: 20, kind: input, shape index: {}]
  %s21 = inlined_call_operand.hbm [shape: f32[8,320], index: 21, kind: output, shape index: {}]
  %s22 = sld [smem:[#allocation0]]
  $region134: #{autoencoder_forward.1} parent=0
    _
  %s24 = ssub.s32 1, %s22
  %s25 = scalar_select 0, %s24, %s22
  $region1: #{autoencoder_forward.1} parent=0
    #allocation2 [shape = 'u8[12288]{0}', space=vmem, size = 0x3000, scoped, tag = 'input window, operand 0, single buffered']
    #allocation3 [shape = 's32[1]{0}', space=sflag, size = 0x4, scoped, tag = 'scoped memory for autoencoder_forward.1']
    #allocation4 [shape = 's32[1]{0}', space=sflag, size = 0x4, scoped, tag = 'scoped memory for autoencoder_forward.1']
    #allocation5 [shape = 'u8[131072]{0}', space=vmem, size = 0x20000, scoped, tag = 'input window, operand 5, single buffered']
    #allocation6 [shape = 's32[1]{0}', space=sflag, size = 0x4, scoped, tag = 'scoped memory for autoencoder_forward.1']
    #allocation7 [shape = 'u8[1024]{0}', space=vmem, size = 0x400, scoped, tag = 'input window, operand 6, single buffered']
    #allocation8 [shape = 'u8[512]{0}', space=vmem, size = 0x400, scoped, tag = 'input window, operand 8, single buffered']
    #allocation9 [shape = 's32[1]{0}', space=sflag, size = 0x4, scoped, tag = 'scoped memory for autoencoder_forward.1']
    #allocation10 [shape = 'u8[32768]{0}', space=vmem, size = 0x8000, scoped, tag = 'input window, operand 9, single buffered']
    #allocation11 [shape = 'u8[512]{0}', space=vmem, size = 0x400, scoped, tag = 'input window, operand 10, single buffered']
    #allocation12 [shape = 's32[1]{0}', space=sflag, size = 0x4, scoped, tag = 'scoped memory for autoencoder_forward.1']
    #allocation13 [shape = 'u8[32768]{0}', space=vmem, size = 0x8000, scoped, tag = 'input window, operand 11, single buffered']
    #allocation14 [shape = 'u8[65536]{0}', space=vmem, size = 0x10000, scoped, tag = 'input window, operand 13, single buffered']
    #allocation15 [shape = 's32[1]{0}', space=sflag, size = 0x4, scoped, tag = 'scoped memory for autoencoder_forward.1']
    #allocation16 [shape = 'u8[131072]{0}', space=vmem, size = 0x20000, scoped, tag = 'input window, operand 15, single buffered']
    #allocation17 [shape = 'u8[131072]{0}', space=vmem, size = 0x20000, scoped, tag = 'input window, operand 17, single buffered']
    #allocation18 [shape = 's32[1]{0}', space=sflag, size = 0x4, scoped, tag = 'scoped memory for autoencoder_forward.1']
    #allocation19 [shape = 'u8[12288]{0}', space=vmem, size = 0x3000, scoped, tag = 'output window, operand 0, single buffered']
    %26 = vsyncpa [#allocation3], 0
    %27 = vsyncpa [#allocation6], 0
    %28 = vsyncpa [#allocation9], 0
    %29 = vsyncpa [#allocation12], 0
    %30 = vsyncpa [#allocation15], 0
    %31 = vsyncpa [#allocation18], 0
    %32 = vsyncpa [#allocation4], 0
    // Predicated region
    $region2: #{autoencoder_forward.1} parent=1 // pred_check
      _
    $region3: #{autoencoder_forward.1} parent=1 // pred_check_branch
      %34 = sbr.rel (0) target = $region5
    $region4: #{autoencoder_forward.1} parent=1 // pred_region
      %36 = vsyncadd [#allocation3], 0
      %s38 = sshll.u32 %s0, 4
      %s39 = int_to_ptr.hbm [resolvable:$true] %s38
      %s40 = sshll.u32 [#allocation2], 4
      %s41 = int_to_ptr.vmem [resolvable:$true] %s40
      %43 = dma.hbm_to_vmem [thread:$0]  %s39, 384, %s41, [#allocation3]
    $region5: #{autoencoder_forward.1} parent=1 // pred_fallthru
      _
    // Predicated region
    $region6: #{autoencoder_forward.1} parent=1 // pred_check
      _
    $region7: #{autoencoder_forward.1} parent=1 // pred_check_branch
      %45 = sbr.rel (0) target = $region9
    $region8: #{autoencoder_forward.1} parent=1 // pred_region
      _
    $region9: #{autoencoder_forward.1} parent=1 // pred_fallthru
      _
    // Predicated region
    $region10: #{autoencoder_forward.1} parent=1 // pred_check
      _
    $region11: #{autoencoder_forward.1} parent=1 // pred_check_branch
      %47 = sbr.rel (0) target = $region13
    $region12: #{autoencoder_forward.1} parent=1 // pred_region
      _
    $region13: #{autoencoder_forward.1} parent=1 // pred_fallthru
      _
    // Predicated region
    $region14: #{autoencoder_forward.1} parent=1 // pred_check
      _
    $region15: #{autoencoder_forward.1} parent=1 // pred_check_branch
      %49 = sbr.rel (0) target = $region17
    $region16: #{autoencoder_forward.1} parent=1 // pred_region
      _
    $region17: #{autoencoder_forward.1} parent=1 // pred_fallthru
      _
    // Predicated region
    $region18: #{autoencoder_forward.1} parent=1 // pred_check
      _
    $region19: #{autoencoder_forward.1} parent=1 // pred_check_branch
      %51 = sbr.rel (0) target = $region21
    $region20: #{autoencoder_forward.1} parent=1 // pred_region
      _
    $region21: #{autoencoder_forward.1} parent=1 // pred_fallthru
      _
    // Predicated region
    $region22: #{autoencoder_forward.1} parent=1 // pred_check
      _
    $region23: #{autoencoder_forward.1} parent=1 // pred_check_branch
      %53 = sbr.rel (0) target = $region25
    $region24: #{autoencoder_forward.1} parent=1 // pred_region
      %55 = vsyncadd [#allocation6], 0
      %s56 = sshll.u32 %s5, 4
      %s57 = int_to_ptr.hbm [resolvable:$true] %s56
      %s58 = sshll.u32 [#allocation5], 4
      %s59 = int_to_ptr.vmem [resolvable:$true] %s58
      %64 = dma.hbm_to_vmem [thread:$0]  %s57, 4096, %s59, [#allocation6], 128, 128, 8
    $region25: #{autoencoder_forward.1} parent=1 // pred_fallthru
      _
    // Predicated region
    $region26: #{autoencoder_forward.1} parent=1 // pred_check
      _
    $region27: #{autoencoder_forward.1} parent=1 // pred_check_branch
      %66 = sbr.rel (0) target = $region29
    $region28: #{autoencoder_forward.1} parent=1 // pred_region
      %68 = vsyncadd [#allocation6], 0
      %s70 = sshll.u32 %s6, 4
      %s71 = int_to_ptr.hbm [resolvable:$true] %s70
      %s72 = sshll.u32 [#allocation7], 4
      %s73 = int_to_ptr.vmem [resolvable:$true] %s72
      %75 = dma.hbm_to_vmem [thread:$0]  %s71, 32, %s73, [#allocation6]
    $region29: #{autoencoder_forward.1} parent=1 // pred_fallthru
      _
    // Predicated region
    $region30: #{autoencoder_forward.1} parent=1 // pred_check
      _
    $region31: #{autoencoder_forward.1} parent=1 // pred_check_branch
      %77 = sbr.rel (0) target = $region33
    $region32: #{autoencoder_forward.1} parent=1 // pred_region
      _
    $region33: #{autoencoder_forward.1} parent=1 // pred_fallthru
      _
    // Predicated region
    $region34: #{autoencoder_forward.1} parent=1 // pred_check
      _
    $region35: #{autoencoder_forward.1} parent=1 // pred_check_branch
      %79 = sbr.rel (0) target = $region37
    $region36: #{autoencoder_forward.1} parent=1 // pred_region
      %81 = vsyncadd [#allocation9], 0
      %s83 = sshll.u32 %s8, 4
      %s84 = int_to_ptr.hbm [resolvable:$true] %s83
      %s85 = sshll.u32 [#allocation8], 4
      %s86 = int_to_ptr.vmem [resolvable:$true] %s85
      %88 = dma.hbm_to_vmem [thread:$0]  %s84, 16, %s86, [#allocation9]
    $region37: #{autoencoder_forward.1} parent=1 // pred_fallthru
      _
    // Predicated region
    $region38: #{autoencoder_forward.1} parent=1 // pred_check
      _
    $region39: #{autoencoder_forward.1} parent=1 // pred_check_branch
      %90 = sbr.rel (0) target = $region41
    $region40: #{autoencoder_forward.1} parent=1 // pred_region
      %92 = vsyncadd [#allocation9], 0
      %s93 = sshll.u32 %s9, 4
      %s94 = int_to_ptr.hbm [resolvable:$true] %s93
      %s95 = sshll.u32 [#allocation10], 4
      %s96 = int_to_ptr.vmem [resolvable:$true] %s95
      %101 = dma.hbm_to_vmem [thread:$0]  %s94, 1024, %s96, [#allocation9], 64, 64, 4
    $region41: #{autoencoder_forward.1} parent=1 // pred_fallthru
      _
    // Predicated region
    $region42: #{autoencoder_forward.1} parent=1 // pred_check
      _
    $region43: #{autoencoder_forward.1} parent=1 // pred_check_branch
      %103 = sbr.rel (0) target = $region45
    $region44: #{autoencoder_forward.1} parent=1 // pred_region
      %105 = vsyncadd [#allocation12], 0
      %s107 = sshll.u32 %s10, 4
      %s108 = int_to_ptr.hbm [resolvable:$true] %s107
      %s109 = sshll.u32 [#allocation11], 4
      %s110 = int_to_ptr.vmem [resolvable:$true] %s109
      %112 = dma.hbm_to_vmem [thread:$0]  %s108, 16, %s110, [#allocation12]
    $region45: #{autoencoder_forward.1} parent=1 // pred_fallthru
      _
    // Predicated region
    $region46: #{autoencoder_forward.1} parent=1 // pred_check
      _
    $region47: #{autoencoder_forward.1} parent=1 // pred_check_branch
      %114 = sbr.rel (0) target = $region49
    $region48: #{autoencoder_forward.1} parent=1 // pred_region
      %116 = vsyncadd [#allocation12], 0
      %s117 = sshll.u32 %s11, 4
      %s118 = int_to_ptr.hbm [resolvable:$true] %s117
      %s119 = sshll.u32 [#allocation13], 4
      %s120 = int_to_ptr.vmem [resolvable:$true] %s119
      %125 = dma.hbm_to_vmem [thread:$0]  %s118, 1024, %s120, [#allocation12], 64, 64, 4
    $region49: #{autoencoder_forward.1} parent=1 // pred_fallthru
      _
    // Predicated region
    $region50: #{autoencoder_forward.1} parent=1 // pred_check
      _
    $region51: #{autoencoder_forward.1} parent=1 // pred_check_branch
      %127 = sbr.rel (0) target = $region53
    $region52: #{autoencoder_forward.1} parent=1 // pred_region
      _
    $region53: #{autoencoder_forward.1} parent=1 // pred_fallthru
      _
    // Predicated region
    $region54: #{autoencoder_forward.1} parent=1 // pred_check
      _
    $region55: #{autoencoder_forward.1} parent=1 // pred_check_branch
      %129 = sbr.rel (0) target = $region57
    $region56: #{autoencoder_forward.1} parent=1 // pred_region
      %131 = vsyncadd [#allocation15], 0
      %s132 = sshll.u32 %s13, 4
      %s133 = int_to_ptr.hbm [resolvable:$true] %s132
      %s134 = sshll.u32 [#allocation14], 4
      %s135 = int_to_ptr.vmem [resolvable:$true] %s134
      %140 = dma.hbm_to_vmem [thread:$0]  %s133, 2048, %s135, [#allocation15], 128, 128, 8
    $region57: #{autoencoder_forward.1} parent=1 // pred_fallthru
      _
    // Predicated region
    $region58: #{autoencoder_forward.1} parent=1 // pred_check
      _
    $region59: #{autoencoder_forward.1} parent=1 // pred_check_branch
      %142 = sbr.rel (0) target = $region61
    $region60: #{autoencoder_forward.1} parent=1 // pred_region
      _
    $region61: #{autoencoder_forward.1} parent=1 // pred_fallthru
      _
    // Predicated region
    $region62: #{autoencoder_forward.1} parent=1 // pred_check
      _
    $region63: #{autoencoder_forward.1} parent=1 // pred_check_branch
      %144 = sbr.rel (0) target = $region65
    $region64: #{autoencoder_forward.1} parent=1 // pred_region
      %146 = vsyncadd [#allocation15], 0
      %s147 = sshll.u32 %s15, 4
      %s148 = int_to_ptr.hbm [resolvable:$true] %s147
      %s149 = sshll.u32 [#allocation16], 4
      %s150 = int_to_ptr.vmem [resolvable:$true] %s149
      %155 = dma.hbm_to_vmem [thread:$0]  %s148, 4096, %s150, [#allocation15], 128, 128, 8
    $region65: #{autoencoder_forward.1} parent=1 // pred_fallthru
      _
    // Predicated region
    $region66: #{autoencoder_forward.1} parent=1 // pred_check
      _
    $region67: #{autoencoder_forward.1} parent=1 // pred_check_branch
      %157 = sbr.rel (0) target = $region69
    $region68: #{autoencoder_forward.1} parent=1 // pred_region
      _
    $region69: #{autoencoder_forward.1} parent=1 // pred_fallthru
      _
    // Predicated region
    $region70: #{autoencoder_forward.1} parent=1 // pred_check
      _
    $region71: #{autoencoder_forward.1} parent=1 // pred_check_branch
      %159 = sbr.rel (0) target = $region73
    $region72: #{autoencoder_forward.1} parent=1 // pred_region
      %161 = vsyncadd [#allocation18], 0
      %s162 = sshll.u32 %s17, 4
      %s163 = int_to_ptr.hbm [resolvable:$true] %s162
      %s164 = sshll.u32 [#allocation17], 4
      %s165 = int_to_ptr.vmem [resolvable:$true] %s164
      %170 = dma.hbm_to_vmem [thread:$0]  %s163, 4096, %s165, [#allocation18], 128, 128, 8
    $region73: #{autoencoder_forward.1} parent=1 // pred_fallthru
      _
    // Predicated region
    $region74: #{autoencoder_forward.1} parent=1 // pred_check
      _
    $region75: #{autoencoder_forward.1} parent=1 // pred_check_branch
      %172 = sbr.rel (0) target = $region77
    $region76: #{autoencoder_forward.1} parent=1 // pred_region
      _
    $region77: #{autoencoder_forward.1} parent=1 // pred_fallthru
      _
    // Predicated region
    $region78: #{autoencoder_forward.1} parent=1 // pred_check
      _
    $region79: #{autoencoder_forward.1} parent=1 // pred_check_branch
      %174 = sbr.rel (0) target = $region81
    $region80: #{autoencoder_forward.1} parent=1 // pred_region
      _
    $region81: #{autoencoder_forward.1} parent=1 // pred_fallthru
      _
    // Predicated region
    $region82: #{autoencoder_forward.1} parent=1 // pred_check
      _
    $region83: #{autoencoder_forward.1} parent=1 // pred_check_branch
      %176 = sbr.rel (0) target = $region85
    $region84: #{autoencoder_forward.1} parent=1 // pred_region
      _
    $region85: #{autoencoder_forward.1} parent=1 // pred_fallthru
      _
    // Predicated region
    $region86: #{autoencoder_forward.1} parent=1 // pred_check
      _
    $region87: #{autoencoder_forward.1} parent=1 // pred_check_branch
      %178 = sbr.rel (0) target = $region89
    $region88: #{autoencoder_forward.1} parent=1 // pred_region
      %180 = dma.done [#allocation3], 384
    $region89: #{autoencoder_forward.1} parent=1 // pred_fallthru
      _
    // Predicated region
    $region90: #{autoencoder_forward.1} parent=1 // pred_check
      _
    $region91: #{autoencoder_forward.1} parent=1 // pred_check_branch
      %182 = sbr.rel (0) target = $region93
    $region92: #{autoencoder_forward.1} parent=1 // pred_region
      %184 = dma.done [#allocation6], 4096
    $region93: #{autoencoder_forward.1} parent=1 // pred_fallthru
      _
    // Predicated region
    $region94: #{autoencoder_forward.1} parent=1 // pred_check
      _
    $region95: #{autoencoder_forward.1} parent=1 // pred_check_branch
      %186 = sbr.rel (0) target = $region97
    $region96: #{autoencoder_forward.1} parent=1 // pred_region
      %188 = dma.done [#allocation6], 32
    $region97: #{autoencoder_forward.1} parent=1 // pred_fallthru
      _
    // Predicated region
    $region98: #{autoencoder_forward.1} parent=1 // pred_check
      _
    $region99: #{autoencoder_forward.1} parent=1 // pred_check_branch
      %190 = sbr.rel (0) target = $region101
    $region100: #{autoencoder_forward.1} parent=1 // pred_region
      %192 = dma.done [#allocation9], 16
    $region101: #{autoencoder_forward.1} parent=1 // pred_fallthru
      _
    // Predicated region
    $region102: #{autoencoder_forward.1} parent=1 // pred_check
      _
    $region103: #{autoencoder_forward.1} parent=1 // pred_check_branch
      %194 = sbr.rel (0) target = $region105
    $region104: #{autoencoder_forward.1} parent=1 // pred_region
      %196 = dma.done [#allocation9], 1024
    $region105: #{autoencoder_forward.1} parent=1 // pred_fallthru
      _
    // Predicated region
    $region106: #{autoencoder_forward.1} parent=1 // pred_check
      _
    $region107: #{autoencoder_forward.1} parent=1 // pred_check_branch
      %198 = sbr.rel (0) target = $region109
    $region108: #{autoencoder_forward.1} parent=1 // pred_region
      %200 = dma.done [#allocation12], 16
    $region109: #{autoencoder_forward.1} parent=1 // pred_fallthru
      _
    // Predicated region
    $region110: #{autoencoder_forward.1} parent=1 // pred_check
      _
    $region111: #{autoencoder_forward.1} parent=1 // pred_check_branch
      %202 = sbr.rel (0) target = $region113
    $region112: #{autoencoder_forward.1} parent=1 // pred_region
      %204 = dma.done [#allocation12], 1024
    $region113: #{autoencoder_forward.1} parent=1 // pred_fallthru
      _
    // Predicated region
    $region114: #{autoencoder_forward.1} parent=1 // pred_check
      _
    $region115: #{autoencoder_forward.1} parent=1 // pred_check_branch
      %206 = sbr.rel (0) target = $region117
    $region116: #{autoencoder_forward.1} parent=1 // pred_region
      %208 = dma.done [#allocation15], 2048
    $region117: #{autoencoder_forward.1} parent=1 // pred_fallthru
      _
    // Predicated region
    $region118: #{autoencoder_forward.1} parent=1 // pred_check
      _
    $region119: #{autoencoder_forward.1} parent=1 // pred_check_branch
      %210 = sbr.rel (0) target = $region121
    $region120: #{autoencoder_forward.1} parent=1 // pred_region
      %212 = dma.done [#allocation15], 4096
    $region121: #{autoencoder_forward.1} parent=1 // pred_fallthru
      _
    // Predicated region
    $region122: #{autoencoder_forward.1} parent=1 // pred_check
      _
    $region123: #{autoencoder_forward.1} parent=1 // pred_check_branch
      %214 = sbr.rel (0) target = $region125
    $region124: #{autoencoder_forward.1} parent=1 // pred_region
      %216 = dma.done [#allocation18], 4096
    $region125: #{autoencoder_forward.1} parent=1 // pred_fallthru
      _
    %v218 = vld [vmem:[#allocation2] sm:$0xff]
    %v219 = vld [vmem:[#allocation2 + $0x8] sm:$0xff]
    %v220 = vld [vmem:[#allocation2 + $0x10] sm:$0xff]
    %v221 = vpack.c.bf16 %v218, %v218
    %v222 = vpack.c.bf16 %v219, %v219
    %v223 = vpack.c.bf16 %v220, %v220
    %v224 = vld [vmem:[%s1] sm:$0xff]
    %v225 = vld [vmem:[%s1 + $0x8] sm:$0xff]
    %v226 = vld [vmem:[%s1 + $0x10] sm:$0xff]
    %v227 = vld [vmem:[%s1 + $0x18] sm:$0xff]
    %v228 = vld [vmem:[%s1 + $0x20] sm:$0xff]
    %v229 = vld [vmem:[%s1 + $0x28] sm:$0xff]
    %v230 = vld [vmem:[%s1 + $0x30] sm:$0xff]
    %v231 = vld [vmem:[%s1 + $0x38] sm:$0xff]
    %v232 = vld [vmem:[%s1 + $0x40] sm:$0xff]
    %v233 = vld [vmem:[%s1 + $0x48] sm:$0xff]
    %v234 = vld [vmem:[%s1 + $0x50] sm:$0xff]
    %v235 = vld [vmem:[%s1 + $0x58] sm:$0xff]
    %v236 = vld [vmem:[%s1 + $0x60] sm:$0xff]
    %v237 = vld [vmem:[%s1 + $0x68] sm:$0xff]
    %v238 = vld [vmem:[%s1 + $0x70] sm:$0xff]
    %v239 = vld [vmem:[%s1 + $0x78] sm:$0xff]
    %v240 = vld [vmem:[%s1 + $0x80] sm:$0xff]
    %v241 = vld [vmem:[%s1 + $0x88] sm:$0xff]
    %v242 = vld [vmem:[%s1 + $0x90] sm:$0xff]
    %v243 = vld [vmem:[%s1 + $0x98] sm:$0xff]
    %v244 = vld [vmem:[%s1 + $0xa0] sm:$0xff]
    %v245 = vld [vmem:[%s1 + $0xa8] sm:$0xff]
    %v246 = vld [vmem:[%s1 + $0xb0] sm:$0xff]
    %v247 = vld [vmem:[%s1 + $0xb8] sm:$0xff]
    %v248 = vld [vmem:[%s1 + $0xc0] sm:$0xff]
    %v249 = vld [vmem:[%s1 + $0xc8] sm:$0xff]
    %v250 = vld [vmem:[%s1 + $0xd0] sm:$0xff]
    %v251 = vld [vmem:[%s1 + $0xd8] sm:$0xff]
    %v252 = vld [vmem:[%s1 + $0xe0] sm:$0xff]
    %v253 = vld [vmem:[%s1 + $0xe8] sm:$0xff]
    %v254 = vld [vmem:[%s1 + $0xf0] sm:$0xff]
    %v255 = vld [vmem:[%s1 + $0xf8] sm:$0xff]
    %v256 = vld [vmem:[%s1 + $0x100] sm:$0xff]
    %v257 = vld [vmem:[%s1 + $0x108] sm:$0xff]
    %v258 = vld [vmem:[%s1 + $0x110] sm:$0xff]
    %v259 = vld [vmem:[%s1 + $0x118] sm:$0xff]
    %v260 = vld [vmem:[%s1 + $0x120] sm:$0xff]
    %v261 = vld [vmem:[%s1 + $0x128] sm:$0xff]
    %v262 = vld [vmem:[%s1 + $0x130] sm:$0xff]
    %v263 = vld [vmem:[%s1 + $0x138] sm:$0xff]
    %v264 = vld [vmem:[%s2] sm:$0x3]
    %v266 = vperm.slane %v264, 0
    %v267 = vperm.slane %v264, 1
    %v310 = vunpack.c.l.b16 %v224
    %v311 = vunpack.c.h.b16 %v224
    %v312 = vunpack.c.l.b16 %v225
    %v313 = vunpack.c.h.b16 %v225
    %v314 = vunpack.c.l.b16 %v226
    %v315 = vunpack.c.h.b16 %v226
    %v316 = vunpack.c.l.b16 %v227
    %v317 = vunpack.c.h.b16 %v227
    %v318 = vunpack.c.l.b16 %v228
    %v319 = vunpack.c.h.b16 %v228
    %v320 = vunpack.c.l.b16 %v229
    %v321 = vunpack.c.h.b16 %v229
    %v322 = vunpack.c.l.b16 %v230
    %v323 = vunpack.c.h.b16 %v230
    %v324 = vunpack.c.l.b16 %v231
    %v325 = vunpack.c.h.b16 %v231
    %v326 = vunpack.c.l.b16 %v232
    %v327 = vunpack.c.h.b16 %v232
    %v328 = vunpack.c.l.b16 %v233
    %v329 = vunpack.c.h.b16 %v233
    %v330 = vunpack.c.l.b16 %v234
    %v331 = vunpack.c.h.b16 %v234
    %v332 = vunpack.c.l.b16 %v235
    %v333 = vunpack.c.h.b16 %v235
    %v334 = vunpack.c.l.b16 %v236
    %v335 = vunpack.c.h.b16 %v236
    %v336 = vunpack.c.l.b16 %v237
    %v337 = vunpack.c.h.b16 %v237
    %v338 = vunpack.c.l.b16 %v238
    %v339 = vunpack.c.h.b16 %v238
    %v340 = vunpack.c.l.b16 %v239
    %v341 = vunpack.c.h.b16 %v239
    %v342 = vunpack.c.l.b16 %v240
    %v343 = vunpack.c.h.b16 %v240
    %v344 = vunpack.c.l.b16 %v241
    %v345 = vunpack.c.h.b16 %v241
    %v346 = vunpack.c.l.b16 %v242
    %v347 = vunpack.c.h.b16 %v242
    %v348 = vunpack.c.l.b16 %v243
    %v349 = vunpack.c.h.b16 %v243
    %v350 = vunpack.c.l.b16 %v244
    %v351 = vunpack.c.h.b16 %v244
    %v352 = vunpack.c.l.b16 %v245
    %v353 = vunpack.c.h.b16 %v245
    %v354 = vunpack.c.l.b16 %v246
    %v355 = vunpack.c.h.b16 %v246
    %v356 = vunpack.c.l.b16 %v247
    %v357 = vunpack.c.h.b16 %v247
    %v358 = vunpack.c.l.b16 %v248
    %v359 = vunpack.c.h.b16 %v248
    %v360 = vunpack.c.l.b16 %v249
    %v361 = vunpack.c.h.b16 %v249
    %v362 = vunpack.c.l.b16 %v250
    %v363 = vunpack.c.h.b16 %v250
    %v364 = vunpack.c.l.b16 %v251
    %v365 = vunpack.c.h.b16 %v251
    %v366 = vunpack.c.l.b16 %v252
    %v367 = vunpack.c.h.b16 %v252
    %v368 = vunpack.c.l.b16 %v253
    %v369 = vunpack.c.h.b16 %v253
    %v370 = vunpack.c.l.b16 %v254
    %v371 = vunpack.c.h.b16 %v254
    %v372 = vunpack.c.l.b16 %v255
    %v373 = vunpack.c.h.b16 %v255
    %v374 = vunpack.c.l.b16 %v256
    %v375 = vunpack.c.h.b16 %v256
    %v376 = vunpack.c.l.b16 %v257
    %v377 = vunpack.c.h.b16 %v257
    %v378 = vunpack.c.l.b16 %v258
    %v379 = vunpack.c.h.b16 %v258
    %v380 = vunpack.c.l.b16 %v259
    %v381 = vunpack.c.h.b16 %v259
    %v382 = vunpack.c.l.b16 %v260
    %v383 = vunpack.c.h.b16 %v260
    %v384 = vunpack.c.l.b16 %v261
    %v385 = vunpack.c.h.b16 %v261
    %v386 = vunpack.c.l.b16 %v262
    %v387 = vunpack.c.h.b16 %v262
    %v388 = vunpack.c.l.b16 %v263
    %v389 = vunpack.c.h.b16 %v263
    %v390 = vpack.c.b16 %v312, %v310
    %v391 = vpack.c.b16 %v313, %v311
    %v392 = vpack.c.b16 %v316, %v314
    %v393 = vpack.c.b16 %v317, %v315
    %v394 = vpack.c.b16 %v320, %v318
    %v395 = vpack.c.b16 %v321, %v319
    %v396 = vpack.c.b16 %v324, %v322
    %v397 = vpack.c.b16 %v325, %v323
    %v398 = vpack.c.b16 %v328, %v326
    %v399 = vpack.c.b16 %v329, %v327
    %v400 = vpack.c.b16 %v332, %v330
    %v401 = vpack.c.b16 %v333, %v331
    %v402 = vpack.c.b16 %v336, %v334
    %v403 = vpack.c.b16 %v337, %v335
    %v404 = vpack.c.b16 %v340, %v338
    %v405 = vpack.c.b16 %v341, %v339
    %v406 = vpack.c.b16 %v344, %v342
    %v407 = vpack.c.b16 %v345, %v343
    %v408 = vpack.c.b16 %v348, %v346
    %v409 = vpack.c.b16 %v349, %v347
    %v410 = vpack.c.b16 %v352, %v350
    %v411 = vpack.c.b16 %v353, %v351
    %v412 = vpack.c.b16 %v356, %v354
    %v413 = vpack.c.b16 %v357, %v355
    %v414 = vpack.c.b16 %v360, %v358
    %v415 = vpack.c.b16 %v361, %v359
    %v416 = vpack.c.b16 %v364, %v362
    %v417 = vpack.c.b16 %v365, %v363
    %v418 = vpack.c.b16 %v368, %v366
    %v419 = vpack.c.b16 %v369, %v367
    %v420 = vpack.c.b16 %v372, %v370
    %v421 = vpack.c.b16 %v373, %v371
    %v422 = vpack.c.b16 %v376, %v374
    %v423 = vpack.c.b16 %v377, %v375
    %v424 = vpack.c.b16 %v380, %v378
    %v425 = vpack.c.b16 %v381, %v379
    %v426 = vpack.c.b16 %v384, %v382
    %v427 = vpack.c.b16 %v385, %v383
    %v428 = vpack.c.b16 %v388, %v386
    %v429 = vpack.c.b16 %v389, %v387
    %vm470 = vcmask 523264
    %v472 = vsel %vm470, %v223, 0
    %474 = vmatpush.bf16.msra.mxu0 %v404
    %475 = vmatpush.bf16.msra.mxu0 %v402
    %476 = vmatpush.bf16.msra.mxu0 %v400
    %477 = vmatpush.bf16.msra.mxu0 %v398
    %478 = vmatpush.bf16.msra.mxu0 %v396
    %479 = vmatpush.bf16.msra.mxu0 %v394
    %480 = vmatpush.bf16.msra.mxu0 %v392
    %481 = vmatpush.bf16.msra.mxu0 %v390
    %482 = vmatmul.bf16.gmra.mxu0 %v221
    %v483 = vpop.f32.mrf.mxu0
    %v484 = vadd.f32 %v266, %v483
    %v485 = vpop.f32.mrf.mxu0
    %486 = vdwg.mxu0
    %487 = vmatpush.bf16.msra.mxu0 %v420
    %488 = vmatpush.bf16.msra.mxu0 %v418
    %489 = vmatpush.bf16.msra.mxu0 %v416
    %490 = vmatpush.bf16.msra.mxu0 %v414
    %491 = vmatpush.bf16.msra.mxu0 %v412
    %492 = vmatpush.bf16.msra.mxu0 %v410
    %493 = vmatpush.bf16.msra.mxu0 %v408
    %494 = vmatpush.bf16.msra.mxu0 %v406
    %495 = vmatmul.bf16.gmra.mxu0 %v222
    %v496 = vpop.f32.mrf.mxu0
    %v497 = vadd.f32 %v484, %v496
    %v498 = vpop.f32.mrf.mxu0
    %499 = vdwg.mxu0
    %500 = vmatpush.bf16.msra.mxu0 0
    %501 = vmatpush.bf16.msra.mxu0 0
    %502 = vmatpush.bf16.msra.mxu0 0
    %503 = vmatpush.bf16.msra.mxu0 0
    %504 = vmatpush.bf16.msra.mxu0 %v428
    %505 = vmatpush.bf16.msra.mxu0 %v426
    %506 = vmatpush.bf16.msra.mxu0 %v424
    %507 = vmatpush.bf16.msra.mxu0 %v422
    %508 = vmatmul.bf16.gmra.mxu0 %v472
    %v509 = vpop.f32.mrf.mxu0
    %v510 = vadd.f32 %v497, %v509
    %v511 = vpop.f32.mrf.mxu0
    %512 = vdwg.mxu0
    %513 = vmatpush.bf16.msra.mxu0 %v405
    %514 = vmatpush.bf16.msra.mxu0 %v403
    %515 = vmatpush.bf16.msra.mxu0 %v401
    %516 = vmatpush.bf16.msra.mxu0 %v399
    %517 = vmatpush.bf16.msra.mxu0 %v397
    %518 = vmatpush.bf16.msra.mxu0 %v395
    %519 = vmatpush.bf16.msra.mxu0 %v393
    %520 = vmatpush.bf16.msra.mxu0 %v391
    %521 = vmatmul.bf16.gmra.mxu0 %v221
    %v522 = vpop.f32.mrf.mxu0
    %v523 = vadd.f32 %v267, %v522
    %v524 = vpop.f32.mrf.mxu0
    %525 = vdwg.mxu0
    %526 = vmatpush.bf16.msra.mxu0 %v421
    %527 = vmatpush.bf16.msra.mxu0 %v419
    %528 = vmatpush.bf16.msra.mxu0 %v417
    %529 = vmatpush.bf16.msra.mxu0 %v415
    %530 = vmatpush.bf16.msra.mxu0 %v413
    %531 = vmatpush.bf16.msra.mxu0 %v411
    %532 = vmatpush.bf16.msra.mxu0 %v409
    %533 = vmatpush.bf16.msra.mxu0 %v407
    %534 = vmatmul.bf16.gmra.mxu0 %v222
    %v535 = vpop.f32.mrf.mxu0
    %v536 = vadd.f32 %v523, %v535
    %v537 = vpop.f32.mrf.mxu0
    %538 = vdwg.mxu0
    %539 = vmatpush.bf16.msra.mxu0 0
    %540 = vmatpush.bf16.msra.mxu0 0
    %541 = vmatpush.bf16.msra.mxu0 0
    %542 = vmatpush.bf16.msra.mxu0 0
    %543 = vmatpush.bf16.msra.mxu0 %v429
    %544 = vmatpush.bf16.msra.mxu0 %v427
    %545 = vmatpush.bf16.msra.mxu0 %v425
    %546 = vmatpush.bf16.msra.mxu0 %v423
    %547 = vmatmul.bf16.gmra.mxu0 %v472
    %v548 = vpop.f32.mrf.mxu0
    %v549 = vadd.f32 %v536, %v548
    %v550 = vpop.f32.mrf.mxu0
    %551 = vdwg.mxu0
    %v552 = vmax.f32 %v510, 0.0
    %v553 = vmax.f32 %v549, 0.0
    %v554 = vpack.c.bf16 %v552, %v552
    %v555 = vpack.c.bf16 %v553, %v553
    %v556 = vld [vmem:[%s3] sm:$0xff]
    %v557 = vld [vmem:[%s3 + $0x8] sm:$0xff]
    %v558 = vld [vmem:[%s3 + $0x10] sm:$0xff]
    %v559 = vld [vmem:[%s3 + $0x18] sm:$0xff]
    %v560 = vld [vmem:[%s3 + $0x20] sm:$0xff]
    %v561 = vld [vmem:[%s3 + $0x28] sm:$0xff]
    %v562 = vld [vmem:[%s3 + $0x30] sm:$0xff]
    %v563 = vld [vmem:[%s3 + $0x38] sm:$0xff]
    %v564 = vld [vmem:[%s3 + $0x40] sm:$0xff]
    %v565 = vld [vmem:[%s3 + $0x48] sm:$0xff]
    %v566 = vld [vmem:[%s3 + $0x50] sm:$0xff]
    %v567 = vld [vmem:[%s3 + $0x58] sm:$0xff]
    %v568 = vld [vmem:[%s3 + $0x60] sm:$0xff]
    %v569 = vld [vmem:[%s3 + $0x68] sm:$0xff]
    %v570 = vld [vmem:[%s3 + $0x70] sm:$0xff]
    %v571 = vld [vmem:[%s3 + $0x78] sm:$0xff]
    %v572 = vld [vmem:[%s3 + $0x80] sm:$0xff]
    %v573 = vld [vmem:[%s3 + $0x88] sm:$0xff]
    %v574 = vld [vmem:[%s3 + $0x90] sm:$0xff]
    %v575 = vld [vmem:[%s3 + $0x98] sm:$0xff]
    %v576 = vld [vmem:[%s3 + $0xa0] sm:$0xff]
    %v577 = vld [vmem:[%s3 + $0xa8] sm:$0xff]
    %v578 = vld [vmem:[%s3 + $0xb0] sm:$0xff]
    %v579 = vld [vmem:[%s3 + $0xb8] sm:$0xff]
    %v580 = vld [vmem:[%s3 + $0xc0] sm:$0xff]
    %v581 = vld [vmem:[%s3 + $0xc8] sm:$0xff]
    %v582 = vld [vmem:[%s3 + $0xd0] sm:$0xff]
    %v583 = vld [vmem:[%s3 + $0xd8] sm:$0xff]
    %v584 = vld [vmem:[%s3 + $0xe0] sm:$0xff]
    %v585 = vld [vmem:[%s3 + $0xe8] sm:$0xff]
    %v586 = vld [vmem:[%s3 + $0xf0] sm:$0xff]
    %v587 = vld [vmem:[%s3 + $0xf8] sm:$0xff]
    %v588 = vld [vmem:[%s4] sm:$0x3]
    %v590 = vperm.slane %v588, 0
    %v591 = vperm.slane %v588, 1
    %v626 = vunpack.c.l.b16 %v556
    %v627 = vunpack.c.h.b16 %v556
    %v628 = vunpack.c.l.b16 %v557
    %v629 = vunpack.c.h.b16 %v557
    %v630 = vunpack.c.l.b16 %v558
    %v631 = vunpack.c.h.b16 %v558
    %v632 = vunpack.c.l.b16 %v559
    %v633 = vunpack.c.h.b16 %v559
    %v634 = vunpack.c.l.b16 %v560
    %v635 = vunpack.c.h.b16 %v560
    %v636 = vunpack.c.l.b16 %v561
    %v637 = vunpack.c.h.b16 %v561
    %v638 = vunpack.c.l.b16 %v562
    %v639 = vunpack.c.h.b16 %v562
    %v640 = vunpack.c.l.b16 %v563
    %v641 = vunpack.c.h.b16 %v563
    %v642 = vunpack.c.l.b16 %v564
    %v643 = vunpack.c.h.b16 %v564
    %v644 = vunpack.c.l.b16 %v565
    %v645 = vunpack.c.h.b16 %v565
    %v646 = vunpack.c.l.b16 %v566
    %v647 = vunpack.c.h.b16 %v566
    %v648 = vunpack.c.l.b16 %v567
    %v649 = vunpack.c.h.b16 %v567
    %v650 = vunpack.c.l.b16 %v568
    %v651 = vunpack.c.h.b16 %v568
    %v652 = vunpack.c.l.b16 %v569
    %v653 = vunpack.c.h.b16 %v569
    %v654 = vunpack.c.l.b16 %v570
    %v655 = vunpack.c.h.b16 %v570
    %v656 = vunpack.c.l.b16 %v571
    %v657 = vunpack.c.h.b16 %v571
    %v658 = vunpack.c.l.b16 %v572
    %v659 = vunpack.c.h.b16 %v572
    %v660 = vunpack.c.l.b16 %v573
    %v661 = vunpack.c.h.b16 %v573
    %v662 = vunpack.c.l.b16 %v574
    %v663 = vunpack.c.h.b16 %v574
    %v664 = vunpack.c.l.b16 %v575
    %v665 = vunpack.c.h.b16 %v575
    %v666 = vunpack.c.l.b16 %v576
    %v667 = vunpack.c.h.b16 %v576
    %v668 = vunpack.c.l.b16 %v577
    %v669 = vunpack.c.h.b16 %v577
    %v670 = vunpack.c.l.b16 %v578
    %v671 = vunpack.c.h.b16 %v578
    %v672 = vunpack.c.l.b16 %v579
    %v673 = vunpack.c.h.b16 %v579
    %v674 = vunpack.c.l.b16 %v580
    %v675 = vunpack.c.h.b16 %v580
    %v676 = vunpack.c.l.b16 %v581
    %v677 = vunpack.c.h.b16 %v581
    %v678 = vunpack.c.l.b16 %v582
    %v679 = vunpack.c.h.b16 %v582
    %v680 = vunpack.c.l.b16 %v583
    %v681 = vunpack.c.h.b16 %v583
    %v682 = vunpack.c.l.b16 %v584
    %v683 = vunpack.c.h.b16 %v584
    %v684 = vunpack.c.l.b16 %v585
    %v685 = vunpack.c.h.b16 %v585
    %v686 = vunpack.c.l.b16 %v586
    %v687 = vunpack.c.h.b16 %v586
    %v688 = vunpack.c.l.b16 %v587
    %v689 = vunpack.c.h.b16 %v587
    %v690 = vpack.c.b16 %v628, %v626
    %v691 = vpack.c.b16 %v629, %v627
    %v692 = vpack.c.b16 %v632, %v630
    %v693 = vpack.c.b16 %v633, %v631
    %v694 = vpack.c.b16 %v636, %v634
    %v695 = vpack.c.b16 %v637, %v635
    %v696 = vpack.c.b16 %v640, %v638
    %v697 = vpack.c.b16 %v641, %v639
    %v698 = vpack.c.b16 %v644, %v642
    %v699 = vpack.c.b16 %v645, %v643
    %v700 = vpack.c.b16 %v648, %v646
    %v701 = vpack.c.b16 %v649, %v647
    %v702 = vpack.c.b16 %v652, %v650
    %v703 = vpack.c.b16 %v653, %v651
    %v704 = vpack.c.b16 %v656, %v654
    %v705 = vpack.c.b16 %v657, %v655
    %v706 = vpack.c.b16 %v660, %v658
    %v707 = vpack.c.b16 %v661, %v659
    %v708 = vpack.c.b16 %v664, %v662
    %v709 = vpack.c.b16 %v665, %v663
    %v710 = vpack.c.b16 %v668, %v666
    %v711 = vpack.c.b16 %v669, %v667
    %v712 = vpack.c.b16 %v672, %v670
    %v713 = vpack.c.b16 %v673, %v671
    %v714 = vpack.c.b16 %v676, %v674
    %v715 = vpack.c.b16 %v677, %v675
    %v716 = vpack.c.b16 %v680, %v678
    %v717 = vpack.c.b16 %v681, %v679
    %v718 = vpack.c.b16 %v684, %v682
    %v719 = vpack.c.b16 %v685, %v683
    %v720 = vpack.c.b16 %v688, %v686
    %v721 = vpack.c.b16 %v689, %v687
    %754 = vmatpush.bf16.msra.mxu0 %v704
    %755 = vmatpush.bf16.msra.mxu0 %v702
    %756 = vmatpush.bf16.msra.mxu0 %v700
    %757 = vmatpush.bf16.msra.mxu0 %v698
    %758 = vmatpush.bf16.msra.mxu0 %v696
    %759 = vmatpush.bf16.msra.mxu0 %v694
    %760 = vmatpush.bf16.msra.mxu0 %v692
    %761 = vmatpush.bf16.msra.mxu0 %v690
    %762 = vmatmul.bf16.gmra.mxu0 %v554
    %v763 = vpop.f32.mrf.mxu0
    %v764 = vadd.f32 %v590, %v763
    %v765 = vpop.f32.mrf.mxu0
    %766 = vdwg.mxu0
    %767 = vmatpush.bf16.msra.mxu0 %v720
    %768 = vmatpush.bf16.msra.mxu0 %v718
    %769 = vmatpush.bf16.msra.mxu0 %v716
    %770 = vmatpush.bf16.msra.mxu0 %v714
    %771 = vmatpush.bf16.msra.mxu0 %v712
    %772 = vmatpush.bf16.msra.mxu0 %v710
    %773 = vmatpush.bf16.msra.mxu0 %v708
    %774 = vmatpush.bf16.msra.mxu0 %v706
    %775 = vmatmul.bf16.gmra.mxu0 %v555
    %v776 = vpop.f32.mrf.mxu0
    %v777 = vadd.f32 %v764, %v776
    %v778 = vpop.f32.mrf.mxu0
    %779 = vdwg.mxu0
    %780 = vmatpush.bf16.msra.mxu0 %v705
    %781 = vmatpush.bf16.msra.mxu0 %v703
    %782 = vmatpush.bf16.msra.mxu0 %v701
    %783 = vmatpush.bf16.msra.mxu0 %v699
    %784 = vmatpush.bf16.msra.mxu0 %v697
    %785 = vmatpush.bf16.msra.mxu0 %v695
    %786 = vmatpush.bf16.msra.mxu0 %v693
    %787 = vmatpush.bf16.msra.mxu0 %v691
    %788 = vmatmul.bf16.gmra.mxu0 %v554
    %v789 = vpop.f32.mrf.mxu0
    %v790 = vadd.f32 %v591, %v789
    %v791 = vpop.f32.mrf.mxu0
    %792 = vdwg.mxu0
    %793 = vmatpush.bf16.msra.mxu0 %v721
    %794 = vmatpush.bf16.msra.mxu0 %v719
    %795 = vmatpush.bf16.msra.mxu0 %v717
    %796 = vmatpush.bf16.msra.mxu0 %v715
    %797 = vmatpush.bf16.msra.mxu0 %v713
    %798 = vmatpush.bf16.msra.mxu0 %v711
    %799 = vmatpush.bf16.msra.mxu0 %v709
    %800 = vmatpush.bf16.msra.mxu0 %v707
    %801 = vmatmul.bf16.gmra.mxu0 %v555
    %v802 = vpop.f32.mrf.mxu0
    %v803 = vadd.f32 %v790, %v802
    %v804 = vpop.f32.mrf.mxu0
    %805 = vdwg.mxu0
    %v806 = vmax.f32 %v777, 0.0
    %v807 = vmax.f32 %v803, 0.0
    %v808 = vpack.c.bf16 %v806, %v806
    %v809 = vpack.c.bf16 %v807, %v807
    %v810 = vld [vmem:[#allocation5] sm:$0xff]
    %v811 = vld [vmem:[#allocation5 + $0x8] sm:$0xff]
    %v812 = vld [vmem:[#allocation5 + $0x10] sm:$0xff]
    %v813 = vld [vmem:[#allocation5 + $0x18] sm:$0xff]
    %v814 = vld [vmem:[#allocation5 + $0x20] sm:$0xff]
    %v815 = vld [vmem:[#allocation5 + $0x28] sm:$0xff]
    %v816 = vld [vmem:[#allocation5 + $0x30] sm:$0xff]
    %v817 = vld [vmem:[#allocation5 + $0x38] sm:$0xff]
    %v818 = vld [vmem:[#allocation5 + $0x40] sm:$0xff]
    %v819 = vld [vmem:[#allocation5 + $0x48] sm:$0xff]
    %v820 = vld [vmem:[#allocation5 + $0x50] sm:$0xff]
    %v821 = vld [vmem:[#allocation5 + $0x58] sm:$0xff]
    %v822 = vld [vmem:[#allocation5 + $0x60] sm:$0xff]
    %v823 = vld [vmem:[#allocation5 + $0x68] sm:$0xff]
    %v824 = vld [vmem:[#allocation5 + $0x70] sm:$0xff]
    %v825 = vld [vmem:[#allocation5 + $0x78] sm:$0xff]
    %v826 = vld [vmem:[#allocation5 + $0x80] sm:$0xff]
    %v827 = vld [vmem:[#allocation5 + $0x88] sm:$0xff]
    %v828 = vld [vmem:[#allocation5 + $0x90] sm:$0xff]
    %v829 = vld [vmem:[#allocation5 + $0x98] sm:$0xff]
    %v830 = vld [vmem:[#allocation5 + $0xa0] sm:$0xff]
    %v831 = vld [vmem:[#allocation5 + $0xa8] sm:$0xff]
    %v832 = vld [vmem:[#allocation5 + $0xb0] sm:$0xff]
    %v833 = vld [vmem:[#allocation5 + $0xb8] sm:$0xff]
    %v834 = vld [vmem:[#allocation5 + $0xc0] sm:$0xff]
    %v835 = vld [vmem:[#allocation5 + $0xc8] sm:$0xff]
    %v836 = vld [vmem:[#allocation5 + $0xd0] sm:$0xff]
    %v837 = vld [vmem:[#allocation5 + $0xd8] sm:$0xff]
    %v838 = vld [vmem:[#allocation5 + $0xe0] sm:$0xff]
    %v839 = vld [vmem:[#allocation5 + $0xe8] sm:$0xff]
    %v840 = vld [vmem:[#allocation5 + $0xf0] sm:$0xff]
    %v841 = vld [vmem:[#allocation5 + $0xf8] sm:$0xff]
    %v842 = vld [vmem:[#allocation7] sm:$0x3]
    %v844 = vperm.slane %v842, 0
    %v845 = vperm.slane %v842, 1
    %v880 = vunpack.c.l.b16 %v810
    %v881 = vunpack.c.h.b16 %v810
    %v882 = vunpack.c.l.b16 %v811
    %v883 = vunpack.c.h.b16 %v811
    %v884 = vunpack.c.l.b16 %v812
    %v885 = vunpack.c.h.b16 %v812
    %v886 = vunpack.c.l.b16 %v813
    %v887 = vunpack.c.h.b16 %v813
    %v888 = vunpack.c.l.b16 %v814
    %v889 = vunpack.c.h.b16 %v814
    %v890 = vunpack.c.l.b16 %v815
    %v891 = vunpack.c.h.b16 %v815
    %v892 = vunpack.c.l.b16 %v816
    %v893 = vunpack.c.h.b16 %v816
    %v894 = vunpack.c.l.b16 %v817
    %v895 = vunpack.c.h.b16 %v817
    %v896 = vunpack.c.l.b16 %v818
    %v897 = vunpack.c.h.b16 %v818
    %v898 = vunpack.c.l.b16 %v819
    %v899 = vunpack.c.h.b16 %v819
    %v900 = vunpack.c.l.b16 %v820
    %v901 = vunpack.c.h.b16 %v820
    %v902 = vunpack.c.l.b16 %v821
    %v903 = vunpack.c.h.b16 %v821
    %v904 = vunpack.c.l.b16 %v822
    %v905 = vunpack.c.h.b16 %v822
    %v906 = vunpack.c.l.b16 %v823
    %v907 = vunpack.c.h.b16 %v823
    %v908 = vunpack.c.l.b16 %v824
    %v909 = vunpack.c.h.b16 %v824
    %v910 = vunpack.c.l.b16 %v825
    %v911 = vunpack.c.h.b16 %v825
    %v912 = vunpack.c.l.b16 %v826
    %v913 = vunpack.c.h.b16 %v826
    %v914 = vunpack.c.l.b16 %v827
    %v915 = vunpack.c.h.b16 %v827
    %v916 = vunpack.c.l.b16 %v828
    %v917 = vunpack.c.h.b16 %v828
    %v918 = vunpack.c.l.b16 %v829
    %v919 = vunpack.c.h.b16 %v829
    %v920 = vunpack.c.l.b16 %v830
    %v921 = vunpack.c.h.b16 %v830
    %v922 = vunpack.c.l.b16 %v831
    %v923 = vunpack.c.h.b16 %v831
    %v924 = vunpack.c.l.b16 %v832
    %v925 = vunpack.c.h.b16 %v832
    %v926 = vunpack.c.l.b16 %v833
    %v927 = vunpack.c.h.b16 %v833
    %v928 = vunpack.c.l.b16 %v834
    %v929 = vunpack.c.h.b16 %v834
    %v930 = vunpack.c.l.b16 %v835
    %v931 = vunpack.c.h.b16 %v835
    %v932 = vunpack.c.l.b16 %v836
    %v933 = vunpack.c.h.b16 %v836
    %v934 = vunpack.c.l.b16 %v837
    %v935 = vunpack.c.h.b16 %v837
    %v936 = vunpack.c.l.b16 %v838
    %v937 = vunpack.c.h.b16 %v838
    %v938 = vunpack.c.l.b16 %v839
    %v939 = vunpack.c.h.b16 %v839
    %v940 = vunpack.c.l.b16 %v840
    %v941 = vunpack.c.h.b16 %v840
    %v942 = vunpack.c.l.b16 %v841
    %v943 = vunpack.c.h.b16 %v841
    %v944 = vpack.c.b16 %v882, %v880
    %v945 = vpack.c.b16 %v883, %v881
    %v946 = vpack.c.b16 %v886, %v884
    %v947 = vpack.c.b16 %v887, %v885
    %v948 = vpack.c.b16 %v890, %v888
    %v949 = vpack.c.b16 %v891, %v889
    %v950 = vpack.c.b16 %v894, %v892
    %v951 = vpack.c.b16 %v895, %v893
    %v952 = vpack.c.b16 %v898, %v896
    %v953 = vpack.c.b16 %v899, %v897
    %v954 = vpack.c.b16 %v902, %v900
    %v955 = vpack.c.b16 %v903, %v901
    %v956 = vpack.c.b16 %v906, %v904
    %v957 = vpack.c.b16 %v907, %v905
    %v958 = vpack.c.b16 %v910, %v908
    %v959 = vpack.c.b16 %v911, %v909
    %v960 = vpack.c.b16 %v914, %v912
    %v961 = vpack.c.b16 %v915, %v913
    %v962 = vpack.c.b16 %v918, %v916
    %v963 = vpack.c.b16 %v919, %v917
    %v964 = vpack.c.b16 %v922, %v920
    %v965 = vpack.c.b16 %v923, %v921
    %v966 = vpack.c.b16 %v926, %v924
    %v967 = vpack.c.b16 %v927, %v925
    %v968 = vpack.c.b16 %v930, %v928
    %v969 = vpack.c.b16 %v931, %v929
    %v970 = vpack.c.b16 %v934, %v932
    %v971 = vpack.c.b16 %v935, %v933
    %v972 = vpack.c.b16 %v938, %v936
    %v973 = vpack.c.b16 %v939, %v937
    %v974 = vpack.c.b16 %v942, %v940
    %v975 = vpack.c.b16 %v943, %v941
    %1008 = vmatpush.bf16.msra.mxu0 %v958
    %1009 = vmatpush.bf16.msra.mxu0 %v956
    %1010 = vmatpush.bf16.msra.mxu0 %v954
    %1011 = vmatpush.bf16.msra.mxu0 %v952
    %1012 = vmatpush.bf16.msra.mxu0 %v950
    %1013 = vmatpush.bf16.msra.mxu0 %v948
    %1014 = vmatpush.bf16.msra.mxu0 %v946
    %1015 = vmatpush.bf16.msra.mxu0 %v944
    %1016 = vmatmul.bf16.gmra.mxu0 %v808
    %v1017 = vpop.f32.mrf.mxu0
    %v1018 = vadd.f32 %v844, %v1017
    %v1019 = vpop.f32.mrf.mxu0
    %1020 = vdwg.mxu0
    %1021 = vmatpush.bf16.msra.mxu0 %v974
    %1022 = vmatpush.bf16.msra.mxu0 %v972
    %1023 = vmatpush.bf16.msra.mxu0 %v970
    %1024 = vmatpush.bf16.msra.mxu0 %v968
    %1025 = vmatpush.bf16.msra.mxu0 %v966
    %1026 = vmatpush.bf16.msra.mxu0 %v964
    %1027 = vmatpush.bf16.msra.mxu0 %v962
    %1028 = vmatpush.bf16.msra.mxu0 %v960
    %1029 = vmatmul.bf16.gmra.mxu0 %v809
    %v1030 = vpop.f32.mrf.mxu0
    %v1031 = vadd.f32 %v1018, %v1030
    %v1032 = vpop.f32.mrf.mxu0
    %1033 = vdwg.mxu0
    %1034 = vmatpush.bf16.msra.mxu0 %v959
    %1035 = vmatpush.bf16.msra.mxu0 %v957
    %1036 = vmatpush.bf16.msra.mxu0 %v955
    %1037 = vmatpush.bf16.msra.mxu0 %v953
    %1038 = vmatpush.bf16.msra.mxu0 %v951
    %1039 = vmatpush.bf16.msra.mxu0 %v949
    %1040 = vmatpush.bf16.msra.mxu0 %v947
    %1041 = vmatpush.bf16.msra.mxu0 %v945
    %1042 = vmatmul.bf16.gmra.mxu0 %v808
    %v1043 = vpop.f32.mrf.mxu0
    %v1044 = vadd.f32 %v845, %v1043
    %v1045 = vpop.f32.mrf.mxu0
    %1046 = vdwg.mxu0
    %1047 = vmatpush.bf16.msra.mxu0 %v975
    %1048 = vmatpush.bf16.msra.mxu0 %v973
    %1049 = vmatpush.bf16.msra.mxu0 %v971
    %1050 = vmatpush.bf16.msra.mxu0 %v969
    %1051 = vmatpush.bf16.msra.mxu0 %v967
    %1052 = vmatpush.bf16.msra.mxu0 %v965
    %1053 = vmatpush.bf16.msra.mxu0 %v963
    %1054 = vmatpush.bf16.msra.mxu0 %v961
    %1055 = vmatmul.bf16.gmra.mxu0 %v809
    %v1056 = vpop.f32.mrf.mxu0
    %v1057 = vadd.f32 %v1044, %v1056
    %v1058 = vpop.f32.mrf.mxu0
    %1059 = vdwg.mxu0
    %v1060 = vmax.f32 %v1031, 0.0
    %v1061 = vmax.f32 %v1057, 0.0
    %v1062 = vpack.c.bf16 %v1060, %v1060
    %v1063 = vpack.c.bf16 %v1061, %v1061
    %v1064 = vld [vmem:[%s7] sm:$0xf]
    %v1065 = vld [vmem:[%s7 + $0x4] sm:$0xf]
    %v1066 = vld [vmem:[%s7 + $0x8] sm:$0xf]
    %v1067 = vld [vmem:[%s7 + $0xc] sm:$0xf]
    %v1068 = vld [vmem:[%s7 + $0x10] sm:$0xf]
    %v1069 = vld [vmem:[%s7 + $0x14] sm:$0xf]
    %v1070 = vld [vmem:[%s7 + $0x18] sm:$0xf]
    %v1071 = vld [vmem:[%s7 + $0x1c] sm:$0xf]
    %v1072 = vld [vmem:[%s7 + $0x20] sm:$0xf]
    %v1073 = vld [vmem:[%s7 + $0x24] sm:$0xf]
    %v1074 = vld [vmem:[%s7 + $0x28] sm:$0xf]
    %v1075 = vld [vmem:[%s7 + $0x2c] sm:$0xf]
    %v1076 = vld [vmem:[%s7 + $0x30] sm:$0xf]
    %v1077 = vld [vmem:[%s7 + $0x34] sm:$0xf]
    %v1078 = vld [vmem:[%s7 + $0x38] sm:$0xf]
    %v1079 = vld [vmem:[%s7 + $0x3c] sm:$0xf]
    %v1080 = vld [vmem:[%s7 + $0x40] sm:$0xf]
    %v1081 = vld [vmem:[%s7 + $0x44] sm:$0xf]
    %v1082 = vld [vmem:[%s7 + $0x48] sm:$0xf]
    %v1083 = vld [vmem:[%s7 + $0x4c] sm:$0xf]
    %v1084 = vld [vmem:[%s7 + $0x50] sm:$0xf]
    %v1085 = vld [vmem:[%s7 + $0x54] sm:$0xf]
    %v1086 = vld [vmem:[%s7 + $0x58] sm:$0xf]
    %v1087 = vld [vmem:[%s7 + $0x5c] sm:$0xf]
    %v1088 = vld [vmem:[%s7 + $0x60] sm:$0xf]
    %v1089 = vld [vmem:[%s7 + $0x64] sm:$0xf]
    %v1090 = vld [vmem:[%s7 + $0x68] sm:$0xf]
    %v1091 = vld [vmem:[%s7 + $0x6c] sm:$0xf]
    %v1092 = vld [vmem:[%s7 + $0x70] sm:$0xf]
    %v1093 = vld [vmem:[%s7 + $0x74] sm:$0xf]
    %v1094 = vld [vmem:[%s7 + $0x78] sm:$0xf]
    %v1095 = vld [vmem:[%s7 + $0x7c] sm:$0xf]
    %v1096 = vld [vmem:[#allocation8] sm:$0x1]
    %v1098 = vperm.slane %v1096, 0
    %v1132 = vunpack.c.l.b16 %v1064
    %v1133 = vunpack.c.l.b16 %v1065
    %v1134 = vunpack.c.l.b16 %v1066
    %v1135 = vunpack.c.l.b16 %v1067
    %v1136 = vunpack.c.l.b16 %v1068
    %v1137 = vunpack.c.l.b16 %v1069
    %v1138 = vunpack.c.l.b16 %v1070
    %v1139 = vunpack.c.l.b16 %v1071
    %v1140 = vunpack.c.l.b16 %v1072
    %v1141 = vunpack.c.l.b16 %v1073
    %v1142 = vunpack.c.l.b16 %v1074
    %v1143 = vunpack.c.l.b16 %v1075
    %v1144 = vunpack.c.l.b16 %v1076
    %v1145 = vunpack.c.l.b16 %v1077
    %v1146 = vunpack.c.l.b16 %v1078
    %v1147 = vunpack.c.l.b16 %v1079
    %v1148 = vunpack.c.l.b16 %v1080
    %v1149 = vunpack.c.l.b16 %v1081
    %v1150 = vunpack.c.l.b16 %v1082
    %v1151 = vunpack.c.l.b16 %v1083
    %v1152 = vunpack.c.l.b16 %v1084
    %v1153 = vunpack.c.l.b16 %v1085
    %v1154 = vunpack.c.l.b16 %v1086
    %v1155 = vunpack.c.l.b16 %v1087
    %v1156 = vunpack.c.l.b16 %v1088
    %v1157 = vunpack.c.l.b16 %v1089
    %v1158 = vunpack.c.l.b16 %v1090
    %v1159 = vunpack.c.l.b16 %v1091
    %v1160 = vunpack.c.l.b16 %v1092
    %v1161 = vunpack.c.l.b16 %v1093
    %v1162 = vunpack.c.l.b16 %v1094
    %v1163 = vunpack.c.l.b16 %v1095
    %v1164 = vpack.c.b16 %v1133, %v1132
    %v1165 = vpack.c.b16 %v1135, %v1134
    %v1166 = vpack.c.b16 %v1137, %v1136
    %v1167 = vpack.c.b16 %v1139, %v1138
    %v1168 = vpack.c.b16 %v1141, %v1140
    %v1169 = vpack.c.b16 %v1143, %v1142
    %v1170 = vpack.c.b16 %v1145, %v1144
    %v1171 = vpack.c.b16 %v1147, %v1146
    %v1172 = vpack.c.b16 %v1149, %v1148
    %v1173 = vpack.c.b16 %v1151, %v1150
    %v1174 = vpack.c.b16 %v1153, %v1152
    %v1175 = vpack.c.b16 %v1155, %v1154
    %v1176 = vpack.c.b16 %v1157, %v1156
    %v1177 = vpack.c.b16 %v1159, %v1158
    %v1178 = vpack.c.b16 %v1161, %v1160
    %v1179 = vpack.c.b16 %v1163, %v1162
    %1196 = vmatpush.bf16.msra.mxu0 %v1171
    %1197 = vmatpush.bf16.msra.mxu0 %v1170
    %1198 = vmatpush.bf16.msra.mxu0 %v1169
    %1199 = vmatpush.bf16.msra.mxu0 %v1168
    %1200 = vmatpush.bf16.msra.mxu0 %v1167
    %1201 = vmatpush.bf16.msra.mxu0 %v1166
    %1202 = vmatpush.bf16.msra.mxu0 %v1165
    %1203 = vmatpush.bf16.msra.mxu0 %v1164
    %1204 = vmatmul.bf16.gmra.mxu0 %v1062
    %v1205 = vpop.f32.mrf.mxu0
    %v1206 = vadd.f32 %v1098, %v1205
    %v1207 = vpop.f32.mrf.mxu0
    %1208 = vdwg.mxu0
    %1209 = vmatpush.bf16.msra.mxu0 %v1179
    %1210 = vmatpush.bf16.msra.mxu0 %v1178
    %1211 = vmatpush.bf16.msra.mxu0 %v1177
    %1212 = vmatpush.bf16.msra.mxu0 %v1176
    %1213 = vmatpush.bf16.msra.mxu0 %v1175
    %1214 = vmatpush.bf16.msra.mxu0 %v1174
    %1215 = vmatpush.bf16.msra.mxu0 %v1173
    %1216 = vmatpush.bf16.msra.mxu0 %v1172
    %1217 = vmatmul.bf16.gmra.mxu0 %v1063
    %v1218 = vpop.f32.mrf.mxu0
    %v1219 = vadd.f32 %v1206, %v1218
    %v1220 = vpop.f32.mrf.mxu0
    %1221 = vdwg.mxu0
    %v1222 = vmax.f32 %v1219, 0.0
    %v1223 = vpack.c.bf16 %v1222, %v1222
    %v1224 = vld [vmem:[#allocation10] sm:$0xf]
    %v1225 = vld [vmem:[#allocation10 + $0x4] sm:$0xf]
    %v1226 = vld [vmem:[#allocation10 + $0x8] sm:$0xf]
    %v1227 = vld [vmem:[#allocation10 + $0xc] sm:$0xf]
    %v1228 = vld [vmem:[#allocation10 + $0x10] sm:$0xf]
    %v1229 = vld [vmem:[#allocation10 + $0x14] sm:$0xf]
    %v1230 = vld [vmem:[#allocation10 + $0x18] sm:$0xf]
    %v1231 = vld [vmem:[#allocation10 + $0x1c] sm:$0xf]
    %v1232 = vld [vmem:[#allocation10 + $0x20] sm:$0xf]
    %v1233 = vld [vmem:[#allocation10 + $0x24] sm:$0xf]
    %v1234 = vld [vmem:[#allocation10 + $0x28] sm:$0xf]
    %v1235 = vld [vmem:[#allocation10 + $0x2c] sm:$0xf]
    %v1236 = vld [vmem:[#allocation10 + $0x30] sm:$0xf]
    %v1237 = vld [vmem:[#allocation10 + $0x34] sm:$0xf]
    %v1238 = vld [vmem:[#allocation10 + $0x38] sm:$0xf]
    %v1239 = vld [vmem:[#allocation10 + $0x3c] sm:$0xf]
    %v1240 = vld [vmem:[#allocation11] sm:$0x1]
    %v1242 = vperm.slane %v1240, 0
    %v1260 = vunpack.c.l.b16 %v1224
    %v1261 = vunpack.c.l.b16 %v1225
    %v1262 = vunpack.c.l.b16 %v1226
    %v1263 = vunpack.c.l.b16 %v1227
    %v1264 = vunpack.c.l.b16 %v1228
    %v1265 = vunpack.c.l.b16 %v1229
    %v1266 = vunpack.c.l.b16 %v1230
    %v1267 = vunpack.c.l.b16 %v1231
    %v1268 = vunpack.c.l.b16 %v1232
    %v1269 = vunpack.c.l.b16 %v1233
    %v1270 = vunpack.c.l.b16 %v1234
    %v1271 = vunpack.c.l.b16 %v1235
    %v1272 = vunpack.c.l.b16 %v1236
    %v1273 = vunpack.c.l.b16 %v1237
    %v1274 = vunpack.c.l.b16 %v1238
    %v1275 = vunpack.c.l.b16 %v1239
    %v1276 = vpack.c.b16 %v1261, %v1260
    %v1277 = vpack.c.b16 %v1263, %v1262
    %v1278 = vpack.c.b16 %v1265, %v1264
    %v1279 = vpack.c.b16 %v1267, %v1266
    %v1280 = vpack.c.b16 %v1269, %v1268
    %v1281 = vpack.c.b16 %v1271, %v1270
    %v1282 = vpack.c.b16 %v1273, %v1272
    %v1283 = vpack.c.b16 %v1275, %v1274
    %1292 = vmatpush.bf16.msra.mxu0 %v1283
    %1293 = vmatpush.bf16.msra.mxu0 %v1282
    %1294 = vmatpush.bf16.msra.mxu0 %v1281
    %1295 = vmatpush.bf16.msra.mxu0 %v1280
    %1296 = vmatpush.bf16.msra.mxu0 %v1279
    %1297 = vmatpush.bf16.msra.mxu0 %v1278
    %1298 = vmatpush.bf16.msra.mxu0 %v1277
    %1299 = vmatpush.bf16.msra.mxu0 %v1276
    %1300 = vmatmul.bf16.gmra.mxu0 %v1223
    %v1301 = vpop.f32.mrf.mxu0
    %v1302 = vadd.f32 %v1242, %v1301
    %v1303 = vpop.f32.mrf.mxu0
    %1304 = vdwg.mxu0
    %v1305 = vmax.f32 %v1302, 0.0
    %v1306 = vpack.c.bf16 %v1305, %v1305
    %v1307 = vld [vmem:[#allocation13] sm:$0xf]
    %v1308 = vld [vmem:[#allocation13 + $0x4] sm:$0xf]
    %v1309 = vld [vmem:[#allocation13 + $0x8] sm:$0xf]
    %v1310 = vld [vmem:[#allocation13 + $0xc] sm:$0xf]
    %v1311 = vld [vmem:[#allocation13 + $0x10] sm:$0xf]
    %v1312 = vld [vmem:[#allocation13 + $0x14] sm:$0xf]
    %v1313 = vld [vmem:[#allocation13 + $0x18] sm:$0xf]
    %v1314 = vld [vmem:[#allocation13 + $0x1c] sm:$0xf]
    %v1315 = vld [vmem:[#allocation13 + $0x20] sm:$0xf]
    %v1316 = vld [vmem:[#allocation13 + $0x24] sm:$0xf]
    %v1317 = vld [vmem:[#allocation13 + $0x28] sm:$0xf]
    %v1318 = vld [vmem:[#allocation13 + $0x2c] sm:$0xf]
    %v1319 = vld [vmem:[#allocation13 + $0x30] sm:$0xf]
    %v1320 = vld [vmem:[#allocation13 + $0x34] sm:$0xf]
    %v1321 = vld [vmem:[#allocation13 + $0x38] sm:$0xf]
    %v1322 = vld [vmem:[#allocation13 + $0x3c] sm:$0xf]
    %v1323 = vld [vmem:[%s12] sm:$0x1]
    %v1325 = vperm.slane %v1323, 0
    %v1343 = vunpack.c.l.b16 %v1307
    %v1344 = vunpack.c.l.b16 %v1308
    %v1345 = vunpack.c.l.b16 %v1309
    %v1346 = vunpack.c.l.b16 %v1310
    %v1347 = vunpack.c.l.b16 %v1311
    %v1348 = vunpack.c.l.b16 %v1312
    %v1349 = vunpack.c.l.b16 %v1313
    %v1350 = vunpack.c.l.b16 %v1314
    %v1351 = vunpack.c.l.b16 %v1315
    %v1352 = vunpack.c.l.b16 %v1316
    %v1353 = vunpack.c.l.b16 %v1317
    %v1354 = vunpack.c.l.b16 %v1318
    %v1355 = vunpack.c.l.b16 %v1319
    %v1356 = vunpack.c.l.b16 %v1320
    %v1357 = vunpack.c.l.b16 %v1321
    %v1358 = vunpack.c.l.b16 %v1322
    %v1359 = vpack.c.b16 %v1344, %v1343
    %v1360 = vpack.c.b16 %v1346, %v1345
    %v1361 = vpack.c.b16 %v1348, %v1347
    %v1362 = vpack.c.b16 %v1350, %v1349
    %v1363 = vpack.c.b16 %v1352, %v1351
    %v1364 = vpack.c.b16 %v1354, %v1353
    %v1365 = vpack.c.b16 %v1356, %v1355
    %v1366 = vpack.c.b16 %v1358, %v1357
    %1375 = vmatpush.bf16.msra.mxu0 %v1366
    %1376 = vmatpush.bf16.msra.mxu0 %v1365
    %1377 = vmatpush.bf16.msra.mxu0 %v1364
    %1378 = vmatpush.bf16.msra.mxu0 %v1363
    %1379 = vmatpush.bf16.msra.mxu0 %v1362
    %1380 = vmatpush.bf16.msra.mxu0 %v1361
    %1381 = vmatpush.bf16.msra.mxu0 %v1360
    %1382 = vmatpush.bf16.msra.mxu0 %v1359
    %1383 = vmatmul.bf16.gmra.mxu0 %v1306
    %v1384 = vpop.f32.mrf.mxu0
    %v1385 = vadd.f32 %v1325, %v1384
    %v1386 = vpop.f32.mrf.mxu0
    %1387 = vdwg.mxu0
    %v1388 = vmax.f32 %v1385, 0.0
    %v1389 = vpack.c.bf16 %v1388, %v1388
    %v1390 = vld [vmem:[#allocation14] sm:$0xff]
    %v1391 = vld [vmem:[#allocation14 + $0x8] sm:$0xff]
    %v1392 = vld [vmem:[#allocation14 + $0x10] sm:$0xff]
    %v1393 = vld [vmem:[#allocation14 + $0x18] sm:$0xff]
    %v1394 = vld [vmem:[#allocation14 + $0x20] sm:$0xff]
    %v1395 = vld [vmem:[#allocation14 + $0x28] sm:$0xff]
    %v1396 = vld [vmem:[#allocation14 + $0x30] sm:$0xff]
    %v1397 = vld [vmem:[#allocation14 + $0x38] sm:$0xff]
    %v1398 = vld [vmem:[#allocation14 + $0x40] sm:$0xff]
    %v1399 = vld [vmem:[#allocation14 + $0x48] sm:$0xff]
    %v1400 = vld [vmem:[#allocation14 + $0x50] sm:$0xff]
    %v1401 = vld [vmem:[#allocation14 + $0x58] sm:$0xff]
    %v1402 = vld [vmem:[#allocation14 + $0x60] sm:$0xff]
    %v1403 = vld [vmem:[#allocation14 + $0x68] sm:$0xff]
    %v1404 = vld [vmem:[#allocation14 + $0x70] sm:$0xff]
    %v1405 = vld [vmem:[#allocation14 + $0x78] sm:$0xff]
    %v1406 = vld [vmem:[%s14] sm:$0x3]
    %v1408 = vperm.slane %v1406, 0
    %v1409 = vperm.slane %v1406, 1
    %v1428 = vunpack.c.l.b16 %v1390
    %v1429 = vunpack.c.h.b16 %v1390
    %v1430 = vunpack.c.l.b16 %v1391
    %v1431 = vunpack.c.h.b16 %v1391
    %v1432 = vunpack.c.l.b16 %v1392
    %v1433 = vunpack.c.h.b16 %v1392
    %v1434 = vunpack.c.l.b16 %v1393
    %v1435 = vunpack.c.h.b16 %v1393
    %v1436 = vunpack.c.l.b16 %v1394
    %v1437 = vunpack.c.h.b16 %v1394
    %v1438 = vunpack.c.l.b16 %v1395
    %v1439 = vunpack.c.h.b16 %v1395
    %v1440 = vunpack.c.l.b16 %v1396
    %v1441 = vunpack.c.h.b16 %v1396
    %v1442 = vunpack.c.l.b16 %v1397
    %v1443 = vunpack.c.h.b16 %v1397
    %v1444 = vunpack.c.l.b16 %v1398
    %v1445 = vunpack.c.h.b16 %v1398
    %v1446 = vunpack.c.l.b16 %v1399
    %v1447 = vunpack.c.h.b16 %v1399
    %v1448 = vunpack.c.l.b16 %v1400
    %v1449 = vunpack.c.h.b16 %v1400
    %v1450 = vunpack.c.l.b16 %v1401
    %v1451 = vunpack.c.h.b16 %v1401
    %v1452 = vunpack.c.l.b16 %v1402
    %v1453 = vunpack.c.h.b16 %v1402
    %v1454 = vunpack.c.l.b16 %v1403
    %v1455 = vunpack.c.h.b16 %v1403
    %v1456 = vunpack.c.l.b16 %v1404
    %v1457 = vunpack.c.h.b16 %v1404
    %v1458 = vunpack.c.l.b16 %v1405
    %v1459 = vunpack.c.h.b16 %v1405
    %v1460 = vpack.c.b16 %v1430, %v1428
    %v1461 = vpack.c.b16 %v1431, %v1429
    %v1462 = vpack.c.b16 %v1434, %v1432
    %v1463 = vpack.c.b16 %v1435, %v1433
    %v1464 = vpack.c.b16 %v1438, %v1436
    %v1465 = vpack.c.b16 %v1439, %v1437
    %v1466 = vpack.c.b16 %v1442, %v1440
    %v1467 = vpack.c.b16 %v1443, %v1441
    %v1468 = vpack.c.b16 %v1446, %v1444
    %v1469 = vpack.c.b16 %v1447, %v1445
    %v1470 = vpack.c.b16 %v1450, %v1448
    %v1471 = vpack.c.b16 %v1451, %v1449
    %v1472 = vpack.c.b16 %v1454, %v1452
    %v1473 = vpack.c.b16 %v1455, %v1453
    %v1474 = vpack.c.b16 %v1458, %v1456
    %v1475 = vpack.c.b16 %v1459, %v1457
    %1492 = vmatpush.bf16.msra.mxu0 %v1474
    %1493 = vmatpush.bf16.msra.mxu0 %v1472
    %1494 = vmatpush.bf16.msra.mxu0 %v1470
    %1495 = vmatpush.bf16.msra.mxu0 %v1468
    %1496 = vmatpush.bf16.msra.mxu0 %v1466
    %1497 = vmatpush.bf16.msra.mxu0 %v1464
    %1498 = vmatpush.bf16.msra.mxu0 %v1462
    %1499 = vmatpush.bf16.msra.mxu0 %v1460
    %1500 = vmatmul.bf16.gmra.mxu0 %v1389
    %v1501 = vpop.f32.mrf.mxu0
    %v1502 = vadd.f32 %v1408, %v1501
    %v1503 = vpop.f32.mrf.mxu0
    %1504 = vdwg.mxu0
    %1505 = vmatpush.bf16.msra.mxu0 %v1475
    %1506 = vmatpush.bf16.msra.mxu0 %v1473
    %1507 = vmatpush.bf16.msra.mxu0 %v1471
    %1508 = vmatpush.bf16.msra.mxu0 %v1469
    %1509 = vmatpush.bf16.msra.mxu0 %v1467
    %1510 = vmatpush.bf16.msra.mxu0 %v1465
    %1511 = vmatpush.bf16.msra.mxu0 %v1463
    %1512 = vmatpush.bf16.msra.mxu0 %v1461
    %1513 = vmatmul.bf16.gmra.mxu0 %v1389
    %v1514 = vpop.f32.mrf.mxu0
    %v1515 = vadd.f32 %v1409, %v1514
    %v1516 = vpop.f32.mrf.mxu0
    %1517 = vdwg.mxu0
    %v1518 = vmax.f32 %v1502, 0.0
    %v1519 = vmax.f32 %v1515, 0.0
    %v1520 = vpack.c.bf16 %v1518, %v1518
    %v1521 = vpack.c.bf16 %v1519, %v1519
    %v1522 = vld [vmem:[#allocation16] sm:$0xff]
    %v1523 = vld [vmem:[#allocation16 + $0x8] sm:$0xff]
    %v1524 = vld [vmem:[#allocation16 + $0x10] sm:$0xff]
    %v1525 = vld [vmem:[#allocation16 + $0x18] sm:$0xff]
    %v1526 = vld [vmem:[#allocation16 + $0x20] sm:$0xff]
    %v1527 = vld [vmem:[#allocation16 + $0x28] sm:$0xff]
    %v1528 = vld [vmem:[#allocation16 + $0x30] sm:$0xff]
    %v1529 = vld [vmem:[#allocation16 + $0x38] sm:$0xff]
    %v1530 = vld [vmem:[#allocation16 + $0x40] sm:$0xff]
    %v1531 = vld [vmem:[#allocation16 + $0x48] sm:$0xff]
    %v1532 = vld [vmem:[#allocation16 + $0x50] sm:$0xff]
    %v1533 = vld [vmem:[#allocation16 + $0x58] sm:$0xff]
    %v1534 = vld [vmem:[#allocation16 + $0x60] sm:$0xff]
    %v1535 = vld [vmem:[#allocation16 + $0x68] sm:$0xff]
    %v1536 = vld [vmem:[#allocation16 + $0x70] sm:$0xff]
    %v1537 = vld [vmem:[#allocation16 + $0x78] sm:$0xff]
    %v1538 = vld [vmem:[#allocation16 + $0x80] sm:$0xff]
    %v1539 = vld [vmem:[#allocation16 + $0x88] sm:$0xff]
    %v1540 = vld [vmem:[#allocation16 + $0x90] sm:$0xff]
    %v1541 = vld [vmem:[#allocation16 + $0x98] sm:$0xff]
    %v1542 = vld [vmem:[#allocation16 + $0xa0] sm:$0xff]
    %v1543 = vld [vmem:[#allocation16 + $0xa8] sm:$0xff]
    %v1544 = vld [vmem:[#allocation16 + $0xb0] sm:$0xff]
    %v1545 = vld [vmem:[#allocation16 + $0xb8] sm:$0xff]
    %v1546 = vld [vmem:[#allocation16 + $0xc0] sm:$0xff]
    %v1547 = vld [vmem:[#allocation16 + $0xc8] sm:$0xff]
    %v1548 = vld [vmem:[#allocation16 + $0xd0] sm:$0xff]
    %v1549 = vld [vmem:[#allocation16 + $0xd8] sm:$0xff]
    %v1550 = vld [vmem:[#allocation16 + $0xe0] sm:$0xff]
    %v1551 = vld [vmem:[#allocation16 + $0xe8] sm:$0xff]
    %v1552 = vld [vmem:[#allocation16 + $0xf0] sm:$0xff]
    %v1553 = vld [vmem:[#allocation16 + $0xf8] sm:$0xff]
    %v1554 = vld [vmem:[%s16] sm:$0x3]
    %v1556 = vperm.slane %v1554, 0
    %v1557 = vperm.slane %v1554, 1
    %v1592 = vunpack.c.l.b16 %v1522
    %v1593 = vunpack.c.h.b16 %v1522
    %v1594 = vunpack.c.l.b16 %v1523
    %v1595 = vunpack.c.h.b16 %v1523
    %v1596 = vunpack.c.l.b16 %v1524
    %v1597 = vunpack.c.h.b16 %v1524
    %v1598 = vunpack.c.l.b16 %v1525
    %v1599 = vunpack.c.h.b16 %v1525
    %v1600 = vunpack.c.l.b16 %v1526
    %v1601 = vunpack.c.h.b16 %v1526
    %v1602 = vunpack.c.l.b16 %v1527
    %v1603 = vunpack.c.h.b16 %v1527
    %v1604 = vunpack.c.l.b16 %v1528
    %v1605 = vunpack.c.h.b16 %v1528
    %v1606 = vunpack.c.l.b16 %v1529
    %v1607 = vunpack.c.h.b16 %v1529
    %v1608 = vunpack.c.l.b16 %v1530
    %v1609 = vunpack.c.h.b16 %v1530
    %v1610 = vunpack.c.l.b16 %v1531
    %v1611 = vunpack.c.h.b16 %v1531
    %v1612 = vunpack.c.l.b16 %v1532
    %v1613 = vunpack.c.h.b16 %v1532
    %v1614 = vunpack.c.l.b16 %v1533
    %v1615 = vunpack.c.h.b16 %v1533
    %v1616 = vunpack.c.l.b16 %v1534
    %v1617 = vunpack.c.h.b16 %v1534
    %v1618 = vunpack.c.l.b16 %v1535
    %v1619 = vunpack.c.h.b16 %v1535
    %v1620 = vunpack.c.l.b16 %v1536
    %v1621 = vunpack.c.h.b16 %v1536
    %v1622 = vunpack.c.l.b16 %v1537
    %v1623 = vunpack.c.h.b16 %v1537
    %v1624 = vunpack.c.l.b16 %v1538
    %v1625 = vunpack.c.h.b16 %v1538
    %v1626 = vunpack.c.l.b16 %v1539
    %v1627 = vunpack.c.h.b16 %v1539
    %v1628 = vunpack.c.l.b16 %v1540
    %v1629 = vunpack.c.h.b16 %v1540
    %v1630 = vunpack.c.l.b16 %v1541
    %v1631 = vunpack.c.h.b16 %v1541
    %v1632 = vunpack.c.l.b16 %v1542
    %v1633 = vunpack.c.h.b16 %v1542
    %v1634 = vunpack.c.l.b16 %v1543
    %v1635 = vunpack.c.h.b16 %v1543
    %v1636 = vunpack.c.l.b16 %v1544
    %v1637 = vunpack.c.h.b16 %v1544
    %v1638 = vunpack.c.l.b16 %v1545
    %v1639 = vunpack.c.h.b16 %v1545
    %v1640 = vunpack.c.l.b16 %v1546
    %v1641 = vunpack.c.h.b16 %v1546
    %v1642 = vunpack.c.l.b16 %v1547
    %v1643 = vunpack.c.h.b16 %v1547
    %v1644 = vunpack.c.l.b16 %v1548
    %v1645 = vunpack.c.h.b16 %v1548
    %v1646 = vunpack.c.l.b16 %v1549
    %v1647 = vunpack.c.h.b16 %v1549
    %v1648 = vunpack.c.l.b16 %v1550
    %v1649 = vunpack.c.h.b16 %v1550
    %v1650 = vunpack.c.l.b16 %v1551
    %v1651 = vunpack.c.h.b16 %v1551
    %v1652 = vunpack.c.l.b16 %v1552
    %v1653 = vunpack.c.h.b16 %v1552
    %v1654 = vunpack.c.l.b16 %v1553
    %v1655 = vunpack.c.h.b16 %v1553
    %v1656 = vpack.c.b16 %v1594, %v1592
    %v1657 = vpack.c.b16 %v1595, %v1593
    %v1658 = vpack.c.b16 %v1598, %v1596
    %v1659 = vpack.c.b16 %v1599, %v1597
    %v1660 = vpack.c.b16 %v1602, %v1600
    %v1661 = vpack.c.b16 %v1603, %v1601
    %v1662 = vpack.c.b16 %v1606, %v1604
    %v1663 = vpack.c.b16 %v1607, %v1605
    %v1664 = vpack.c.b16 %v1610, %v1608
    %v1665 = vpack.c.b16 %v1611, %v1609
    %v1666 = vpack.c.b16 %v1614, %v1612
    %v1667 = vpack.c.b16 %v1615, %v1613
    %v1668 = vpack.c.b16 %v1618, %v1616
    %v1669 = vpack.c.b16 %v1619, %v1617
    %v1670 = vpack.c.b16 %v1622, %v1620
    %v1671 = vpack.c.b16 %v1623, %v1621
    %v1672 = vpack.c.b16 %v1626, %v1624
    %v1673 = vpack.c.b16 %v1627, %v1625
    %v1674 = vpack.c.b16 %v1630, %v1628
    %v1675 = vpack.c.b16 %v1631, %v1629
    %v1676 = vpack.c.b16 %v1634, %v1632
    %v1677 = vpack.c.b16 %v1635, %v1633
    %v1678 = vpack.c.b16 %v1638, %v1636
    %v1679 = vpack.c.b16 %v1639, %v1637
    %v1680 = vpack.c.b16 %v1642, %v1640
    %v1681 = vpack.c.b16 %v1643, %v1641
    %v1682 = vpack.c.b16 %v1646, %v1644
    %v1683 = vpack.c.b16 %v1647, %v1645
    %v1684 = vpack.c.b16 %v1650, %v1648
    %v1685 = vpack.c.b16 %v1651, %v1649
    %v1686 = vpack.c.b16 %v1654, %v1652
    %v1687 = vpack.c.b16 %v1655, %v1653
    %1720 = vmatpush.bf16.msra.mxu0 %v1670
    %1721 = vmatpush.bf16.msra.mxu0 %v1668
    %1722 = vmatpush.bf16.msra.mxu0 %v1666
    %1723 = vmatpush.bf16.msra.mxu0 %v1664
    %1724 = vmatpush.bf16.msra.mxu0 %v1662
    %1725 = vmatpush.bf16.msra.mxu0 %v1660
    %1726 = vmatpush.bf16.msra.mxu0 %v1658
    %1727 = vmatpush.bf16.msra.mxu0 %v1656
    %1728 = vmatmul.bf16.gmra.mxu0 %v1520
    %v1729 = vpop.f32.mrf.mxu0
    %v1730 = vadd.f32 %v1556, %v1729
    %v1731 = vpop.f32.mrf.mxu0
    %1732 = vdwg.mxu0
    %1733 = vmatpush.bf16.msra.mxu0 %v1686
    %1734 = vmatpush.bf16.msra.mxu0 %v1684
    %1735 = vmatpush.bf16.msra.mxu0 %v1682
    %1736 = vmatpush.bf16.msra.mxu0 %v1680
    %1737 = vmatpush.bf16.msra.mxu0 %v1678
    %1738 = vmatpush.bf16.msra.mxu0 %v1676
    %1739 = vmatpush.bf16.msra.mxu0 %v1674
    %1740 = vmatpush.bf16.msra.mxu0 %v1672
    %1741 = vmatmul.bf16.gmra.mxu0 %v1521
    %v1742 = vpop.f32.mrf.mxu0
    %v1743 = vadd.f32 %v1730, %v1742
    %v1744 = vpop.f32.mrf.mxu0
    %1745 = vdwg.mxu0
    %1746 = vmatpush.bf16.msra.mxu0 %v1671
    %1747 = vmatpush.bf16.msra.mxu0 %v1669
    %1748 = vmatpush.bf16.msra.mxu0 %v1667
    %1749 = vmatpush.bf16.msra.mxu0 %v1665
    %1750 = vmatpush.bf16.msra.mxu0 %v1663
    %1751 = vmatpush.bf16.msra.mxu0 %v1661
    %1752 = vmatpush.bf16.msra.mxu0 %v1659
    %1753 = vmatpush.bf16.msra.mxu0 %v1657
    %1754 = vmatmul.bf16.gmra.mxu0 %v1520
    %v1755 = vpop.f32.mrf.mxu0
    %v1756 = vadd.f32 %v1557, %v1755
    %v1757 = vpop.f32.mrf.mxu0
    %1758 = vdwg.mxu0
    %1759 = vmatpush.bf16.msra.mxu0 %v1687
    %1760 = vmatpush.bf16.msra.mxu0 %v1685
    %1761 = vmatpush.bf16.msra.mxu0 %v1683
    %1762 = vmatpush.bf16.msra.mxu0 %v1681
    %1763 = vmatpush.bf16.msra.mxu0 %v1679
    %1764 = vmatpush.bf16.msra.mxu0 %v1677
    %1765 = vmatpush.bf16.msra.mxu0 %v1675
    %1766 = vmatpush.bf16.msra.mxu0 %v1673
    %1767 = vmatmul.bf16.gmra.mxu0 %v1521
    %v1768 = vpop.f32.mrf.mxu0
    %v1769 = vadd.f32 %v1756, %v1768
    %v1770 = vpop.f32.mrf.mxu0
    %1771 = vdwg.mxu0
    %v1772 = vmax.f32 %v1743, 0.0
    %v1773 = vmax.f32 %v1769, 0.0
    %v1774 = vpack.c.bf16 %v1772, %v1772
    %v1775 = vpack.c.bf16 %v1773, %v1773
    %v1776 = vld [vmem:[#allocation17] sm:$0xff]
    %v1777 = vld [vmem:[#allocation17 + $0x8] sm:$0xff]
    %v1778 = vld [vmem:[#allocation17 + $0x10] sm:$0xff]
    %v1779 = vld [vmem:[#allocation17 + $0x18] sm:$0xff]
    %v1780 = vld [vmem:[#allocation17 + $0x20] sm:$0xff]
    %v1781 = vld [vmem:[#allocation17 + $0x28] sm:$0xff]
    %v1782 = vld [vmem:[#allocation17 + $0x30] sm:$0xff]
    %v1783 = vld [vmem:[#allocation17 + $0x38] sm:$0xff]
    %v1784 = vld [vmem:[#allocation17 + $0x40] sm:$0xff]
    %v1785 = vld [vmem:[#allocation17 + $0x48] sm:$0xff]
    %v1786 = vld [vmem:[#allocation17 + $0x50] sm:$0xff]
    %v1787 = vld [vmem:[#allocation17 + $0x58] sm:$0xff]
    %v1788 = vld [vmem:[#allocation17 + $0x60] sm:$0xff]
    %v1789 = vld [vmem:[#allocation17 + $0x68] sm:$0xff]
    %v1790 = vld [vmem:[#allocation17 + $0x70] sm:$0xff]
    %v1791 = vld [vmem:[#allocation17 + $0x78] sm:$0xff]
    %v1792 = vld [vmem:[#allocation17 + $0x80] sm:$0xff]
    %v1793 = vld [vmem:[#allocation17 + $0x88] sm:$0xff]
    %v1794 = vld [vmem:[#allocation17 + $0x90] sm:$0xff]
    %v1795 = vld [vmem:[#allocation17 + $0x98] sm:$0xff]
    %v1796 = vld [vmem:[#allocation17 + $0xa0] sm:$0xff]
    %v1797 = vld [vmem:[#allocation17 + $0xa8] sm:$0xff]
    %v1798 = vld [vmem:[#allocation17 + $0xb0] sm:$0xff]
    %v1799 = vld [vmem:[#allocation17 + $0xb8] sm:$0xff]
    %v1800 = vld [vmem:[#allocation17 + $0xc0] sm:$0xff]
    %v1801 = vld [vmem:[#allocation17 + $0xc8] sm:$0xff]
    %v1802 = vld [vmem:[#allocation17 + $0xd0] sm:$0xff]
    %v1803 = vld [vmem:[#allocation17 + $0xd8] sm:$0xff]
    %v1804 = vld [vmem:[#allocation17 + $0xe0] sm:$0xff]
    %v1805 = vld [vmem:[#allocation17 + $0xe8] sm:$0xff]
    %v1806 = vld [vmem:[#allocation17 + $0xf0] sm:$0xff]
    %v1807 = vld [vmem:[#allocation17 + $0xf8] sm:$0xff]
    %v1808 = vld [vmem:[%s18] sm:$0x3]
    %v1810 = vperm.slane %v1808, 0
    %v1811 = vperm.slane %v1808, 1
    %v1846 = vunpack.c.l.b16 %v1776
    %v1847 = vunpack.c.h.b16 %v1776
    %v1848 = vunpack.c.l.b16 %v1777
    %v1849 = vunpack.c.h.b16 %v1777
    %v1850 = vunpack.c.l.b16 %v1778
    %v1851 = vunpack.c.h.b16 %v1778
    %v1852 = vunpack.c.l.b16 %v1779
    %v1853 = vunpack.c.h.b16 %v1779
    %v1854 = vunpack.c.l.b16 %v1780
    %v1855 = vunpack.c.h.b16 %v1780
    %v1856 = vunpack.c.l.b16 %v1781
    %v1857 = vunpack.c.h.b16 %v1781
    %v1858 = vunpack.c.l.b16 %v1782
    %v1859 = vunpack.c.h.b16 %v1782
    %v1860 = vunpack.c.l.b16 %v1783
    %v1861 = vunpack.c.h.b16 %v1783
    %v1862 = vunpack.c.l.b16 %v1784
    %v1863 = vunpack.c.h.b16 %v1784
    %v1864 = vunpack.c.l.b16 %v1785
    %v1865 = vunpack.c.h.b16 %v1785
    %v1866 = vunpack.c.l.b16 %v1786
    %v1867 = vunpack.c.h.b16 %v1786
    %v1868 = vunpack.c.l.b16 %v1787
    %v1869 = vunpack.c.h.b16 %v1787
    %v1870 = vunpack.c.l.b16 %v1788
    %v1871 = vunpack.c.h.b16 %v1788
    %v1872 = vunpack.c.l.b16 %v1789
    %v1873 = vunpack.c.h.b16 %v1789
    %v1874 = vunpack.c.l.b16 %v1790
    %v1875 = vunpack.c.h.b16 %v1790
    %v1876 = vunpack.c.l.b16 %v1791
    %v1877 = vunpack.c.h.b16 %v1791
    %v1878 = vunpack.c.l.b16 %v1792
    %v1879 = vunpack.c.h.b16 %v1792
    %v1880 = vunpack.c.l.b16 %v1793
    %v1881 = vunpack.c.h.b16 %v1793
    %v1882 = vunpack.c.l.b16 %v1794
    %v1883 = vunpack.c.h.b16 %v1794
    %v1884 = vunpack.c.l.b16 %v1795
    %v1885 = vunpack.c.h.b16 %v1795
    %v1886 = vunpack.c.l.b16 %v1796
    %v1887 = vunpack.c.h.b16 %v1796
    %v1888 = vunpack.c.l.b16 %v1797
    %v1889 = vunpack.c.h.b16 %v1797
    %v1890 = vunpack.c.l.b16 %v1798
    %v1891 = vunpack.c.h.b16 %v1798
    %v1892 = vunpack.c.l.b16 %v1799
    %v1893 = vunpack.c.h.b16 %v1799
    %v1894 = vunpack.c.l.b16 %v1800
    %v1895 = vunpack.c.h.b16 %v1800
    %v1896 = vunpack.c.l.b16 %v1801
    %v1897 = vunpack.c.h.b16 %v1801
    %v1898 = vunpack.c.l.b16 %v1802
    %v1899 = vunpack.c.h.b16 %v1802
    %v1900 = vunpack.c.l.b16 %v1803
    %v1901 = vunpack.c.h.b16 %v1803
    %v1902 = vunpack.c.l.b16 %v1804
    %v1903 = vunpack.c.h.b16 %v1804
    %v1904 = vunpack.c.l.b16 %v1805
    %v1905 = vunpack.c.h.b16 %v1805
    %v1906 = vunpack.c.l.b16 %v1806
    %v1907 = vunpack.c.h.b16 %v1806
    %v1908 = vunpack.c.l.b16 %v1807
    %v1909 = vunpack.c.h.b16 %v1807
    %v1910 = vpack.c.b16 %v1848, %v1846
    %v1911 = vpack.c.b16 %v1849, %v1847
    %v1912 = vpack.c.b16 %v1852, %v1850
    %v1913 = vpack.c.b16 %v1853, %v1851
    %v1914 = vpack.c.b16 %v1856, %v1854
    %v1915 = vpack.c.b16 %v1857, %v1855
    %v1916 = vpack.c.b16 %v1860, %v1858
    %v1917 = vpack.c.b16 %v1861, %v1859
    %v1918 = vpack.c.b16 %v1864, %v1862
    %v1919 = vpack.c.b16 %v1865, %v1863
    %v1920 = vpack.c.b16 %v1868, %v1866
    %v1921 = vpack.c.b16 %v1869, %v1867
    %v1922 = vpack.c.b16 %v1872, %v1870
    %v1923 = vpack.c.b16 %v1873, %v1871
    %v1924 = vpack.c.b16 %v1876, %v1874
    %v1925 = vpack.c.b16 %v1877, %v1875
    %v1926 = vpack.c.b16 %v1880, %v1878
    %v1927 = vpack.c.b16 %v1881, %v1879
    %v1928 = vpack.c.b16 %v1884, %v1882
    %v1929 = vpack.c.b16 %v1885, %v1883
    %v1930 = vpack.c.b16 %v1888, %v1886
    %v1931 = vpack.c.b16 %v1889, %v1887
    %v1932 = vpack.c.b16 %v1892, %v1890
    %v1933 = vpack.c.b16 %v1893, %v1891
    %v1934 = vpack.c.b16 %v1896, %v1894
    %v1935 = vpack.c.b16 %v1897, %v1895
    %v1936 = vpack.c.b16 %v1900, %v1898
    %v1937 = vpack.c.b16 %v1901, %v1899
    %v1938 = vpack.c.b16 %v1904, %v1902
    %v1939 = vpack.c.b16 %v1905, %v1903
    %v1940 = vpack.c.b16 %v1908, %v1906
    %v1941 = vpack.c.b16 %v1909, %v1907
    %1974 = vmatpush.bf16.msra.mxu0 %v1924
    %1975 = vmatpush.bf16.msra.mxu0 %v1922
    %1976 = vmatpush.bf16.msra.mxu0 %v1920
    %1977 = vmatpush.bf16.msra.mxu0 %v1918
    %1978 = vmatpush.bf16.msra.mxu0 %v1916
    %1979 = vmatpush.bf16.msra.mxu0 %v1914
    %1980 = vmatpush.bf16.msra.mxu0 %v1912
    %1981 = vmatpush.bf16.msra.mxu0 %v1910
    %1982 = vmatmul.bf16.gmra.mxu0 %v1774
    %v1983 = vpop.f32.mrf.mxu0
    %v1984 = vadd.f32 %v1810, %v1983
    %v1985 = vpop.f32.mrf.mxu0
    %1986 = vdwg.mxu0
    %1987 = vmatpush.bf16.msra.mxu0 %v1940
    %1988 = vmatpush.bf16.msra.mxu0 %v1938
    %1989 = vmatpush.bf16.msra.mxu0 %v1936
    %1990 = vmatpush.bf16.msra.mxu0 %v1934
    %1991 = vmatpush.bf16.msra.mxu0 %v1932
    %1992 = vmatpush.bf16.msra.mxu0 %v1930
    %1993 = vmatpush.bf16.msra.mxu0 %v1928
    %1994 = vmatpush.bf16.msra.mxu0 %v1926
    %1995 = vmatmul.bf16.gmra.mxu0 %v1775
    %v1996 = vpop.f32.mrf.mxu0
    %v1997 = vadd.f32 %v1984, %v1996
    %v1998 = vpop.f32.mrf.mxu0
    %1999 = vdwg.mxu0
    %2000 = vmatpush.bf16.msra.mxu0 %v1925
    %2001 = vmatpush.bf16.msra.mxu0 %v1923
    %2002 = vmatpush.bf16.msra.mxu0 %v1921
    %2003 = vmatpush.bf16.msra.mxu0 %v1919
    %2004 = vmatpush.bf16.msra.mxu0 %v1917
    %2005 = vmatpush.bf16.msra.mxu0 %v1915
    %2006 = vmatpush.bf16.msra.mxu0 %v1913
    %2007 = vmatpush.bf16.msra.mxu0 %v1911
    %2008 = vmatmul.bf16.gmra.mxu0 %v1774
    %v2009 = vpop.f32.mrf.mxu0
    %v2010 = vadd.f32 %v1811, %v2009
    %v2011 = vpop.f32.mrf.mxu0
    %2012 = vdwg.mxu0
    %2013 = vmatpush.bf16.msra.mxu0 %v1941
    %2014 = vmatpush.bf16.msra.mxu0 %v1939
    %2015 = vmatpush.bf16.msra.mxu0 %v1937
    %2016 = vmatpush.bf16.msra.mxu0 %v1935
    %2017 = vmatpush.bf16.msra.mxu0 %v1933
    %2018 = vmatpush.bf16.msra.mxu0 %v1931
    %2019 = vmatpush.bf16.msra.mxu0 %v1929
    %2020 = vmatpush.bf16.msra.mxu0 %v1927
    %2021 = vmatmul.bf16.gmra.mxu0 %v1775
    %v2022 = vpop.f32.mrf.mxu0
    %v2023 = vadd.f32 %v2010, %v2022
    %v2024 = vpop.f32.mrf.mxu0
    %2025 = vdwg.mxu0
    %v2026 = vmax.f32 %v1997, 0.0
    %v2027 = vmax.f32 %v2023, 0.0
    %v2028 = vpack.c.bf16 %v2026, %v2026
    %v2029 = vpack.c.bf16 %v2027, %v2027
    %v2030 = vld [vmem:[%s19] sm:$0xff]
    %v2031 = vld [vmem:[%s19 + $0x8] sm:$0xf]
    %v2032 = vld [vmem:[%s19 + $0xc] sm:$0xff]
    %v2033 = vld [vmem:[%s19 + $0x14] sm:$0xf]
    %v2034 = vld [vmem:[%s19 + $0x18] sm:$0xff]
    %v2035 = vld [vmem:[%s19 + $0x20] sm:$0xf]
    %v2036 = vld [vmem:[%s19 + $0x24] sm:$0xff]
    %v2037 = vld [vmem:[%s19 + $0x2c] sm:$0xf]
    %v2038 = vld [vmem:[%s19 + $0x30] sm:$0xff]
    %v2039 = vld [vmem:[%s19 + $0x38] sm:$0xf]
    %v2040 = vld [vmem:[%s19 + $0x3c] sm:$0xff]
    %v2041 = vld [vmem:[%s19 + $0x44] sm:$0xf]
    %v2042 = vld [vmem:[%s19 + $0x48] sm:$0xff]
    %v2043 = vld [vmem:[%s19 + $0x50] sm:$0xf]
    %v2044 = vld [vmem:[%s19 + $0x54] sm:$0xff]
    %v2045 = vld [vmem:[%s19 + $0x5c] sm:$0xf]
    %v2046 = vld [vmem:[%s19 + $0x60] sm:$0xff]
    %v2047 = vld [vmem:[%s19 + $0x68] sm:$0xf]
    %v2048 = vld [vmem:[%s19 + $0x6c] sm:$0xff]
    %v2049 = vld [vmem:[%s19 + $0x74] sm:$0xf]
    %v2050 = vld [vmem:[%s19 + $0x78] sm:$0xff]
    %v2051 = vld [vmem:[%s19 + $0x80] sm:$0xf]
    %v2052 = vld [vmem:[%s19 + $0x84] sm:$0xff]
    %v2053 = vld [vmem:[%s19 + $0x8c] sm:$0xf]
    %v2054 = vld [vmem:[%s19 + $0x90] sm:$0xff]
    %v2055 = vld [vmem:[%s19 + $0x98] sm:$0xf]
    %v2056 = vld [vmem:[%s19 + $0x9c] sm:$0xff]
    %v2057 = vld [vmem:[%s19 + $0xa4] sm:$0xf]
    %v2058 = vld [vmem:[%s19 + $0xa8] sm:$0xff]
    %v2059 = vld [vmem:[%s19 + $0xb0] sm:$0xf]
    %v2060 = vld [vmem:[%s19 + $0xb4] sm:$0xff]
    %v2061 = vld [vmem:[%s19 + $0xbc] sm:$0xf]
    %v2062 = vld [vmem:[%s19 + $0xc0] sm:$0xff]
    %v2063 = vld [vmem:[%s19 + $0xc8] sm:$0xf]
    %v2064 = vld [vmem:[%s19 + $0xcc] sm:$0xff]
    %v2065 = vld [vmem:[%s19 + $0xd4] sm:$0xf]
    %v2066 = vld [vmem:[%s19 + $0xd8] sm:$0xff]
    %v2067 = vld [vmem:[%s19 + $0xe0] sm:$0xf]
    %v2068 = vld [vmem:[%s19 + $0xe4] sm:$0xff]
    %v2069 = vld [vmem:[%s19 + $0xec] sm:$0xf]
    %v2070 = vld [vmem:[%s19 + $0xf0] sm:$0xff]
    %v2071 = vld [vmem:[%s19 + $0xf8] sm:$0xf]
    %v2072 = vld [vmem:[%s19 + $0xfc] sm:$0xff]
    %v2073 = vld [vmem:[%s19 + $0x104] sm:$0xf]
    %v2074 = vld [vmem:[%s19 + $0x108] sm:$0xff]
    %v2075 = vld [vmem:[%s19 + $0x110] sm:$0xf]
    %v2076 = vld [vmem:[%s19 + $0x114] sm:$0xff]
    %v2077 = vld [vmem:[%s19 + $0x11c] sm:$0xf]
    %v2078 = vld [vmem:[%s19 + $0x120] sm:$0xff]
    %v2079 = vld [vmem:[%s19 + $0x128] sm:$0xf]
    %v2080 = vld [vmem:[%s19 + $0x12c] sm:$0xff]
    %v2081 = vld [vmem:[%s19 + $0x134] sm:$0xf]
    %v2082 = vld [vmem:[%s19 + $0x138] sm:$0xff]
    %v2083 = vld [vmem:[%s19 + $0x140] sm:$0xf]
    %v2084 = vld [vmem:[%s19 + $0x144] sm:$0xff]
    %v2085 = vld [vmem:[%s19 + $0x14c] sm:$0xf]
    %v2086 = vld [vmem:[%s19 + $0x150] sm:$0xff]
    %v2087 = vld [vmem:[%s19 + $0x158] sm:$0xf]
    %v2088 = vld [vmem:[%s19 + $0x15c] sm:$0xff]
    %v2089 = vld [vmem:[%s19 + $0x164] sm:$0xf]
    %v2090 = vld [vmem:[%s19 + $0x168] sm:$0xff]
    %v2091 = vld [vmem:[%s19 + $0x170] sm:$0xf]
    %v2092 = vld [vmem:[%s19 + $0x174] sm:$0xff]
    %v2093 = vld [vmem:[%s19 + $0x17c] sm:$0xf]
    %v2094 = vld [vmem:[%s20] sm:$0x7]
    %v2096 = vperm.slane %v2094, 0
    %v2097 = vperm.slane %v2094, 1
    %v2098 = vperm.slane %v2094, 2
    %v2166 = vunpack.c.l.b16 %v2030
    %v2167 = vunpack.c.h.b16 %v2030
    %v2168 = vunpack.c.l.b16 %v2031
    %v2169 = vunpack.c.l.b16 %v2032
    %v2170 = vunpack.c.h.b16 %v2032
    %v2171 = vunpack.c.l.b16 %v2033
    %v2172 = vunpack.c.l.b16 %v2034
    %v2173 = vunpack.c.h.b16 %v2034
    %v2174 = vunpack.c.l.b16 %v2035
    %v2175 = vunpack.c.l.b16 %v2036
    %v2176 = vunpack.c.h.b16 %v2036
    %v2177 = vunpack.c.l.b16 %v2037
    %v2178 = vunpack.c.l.b16 %v2038
    %v2179 = vunpack.c.h.b16 %v2038
    %v2180 = vunpack.c.l.b16 %v2039
    %v2181 = vunpack.c.l.b16 %v2040
    %v2182 = vunpack.c.h.b16 %v2040
    %v2183 = vunpack.c.l.b16 %v2041
    %v2184 = vunpack.c.l.b16 %v2042
    %v2185 = vunpack.c.h.b16 %v2042
    %v2186 = vunpack.c.l.b16 %v2043
    %v2187 = vunpack.c.l.b16 %v2044
    %v2188 = vunpack.c.h.b16 %v2044
    %v2189 = vunpack.c.l.b16 %v2045
    %v2190 = vunpack.c.l.b16 %v2046
    %v2191 = vunpack.c.h.b16 %v2046
    %v2192 = vunpack.c.l.b16 %v2047
    %v2193 = vunpack.c.l.b16 %v2048
    %v2194 = vunpack.c.h.b16 %v2048
    %v2195 = vunpack.c.l.b16 %v2049
    %v2196 = vunpack.c.l.b16 %v2050
    %v2197 = vunpack.c.h.b16 %v2050
    %v2198 = vunpack.c.l.b16 %v2051
    %v2199 = vunpack.c.l.b16 %v2052
    %v2200 = vunpack.c.h.b16 %v2052
    %v2201 = vunpack.c.l.b16 %v2053
    %v2202 = vunpack.c.l.b16 %v2054
    %v2203 = vunpack.c.h.b16 %v2054
    %v2204 = vunpack.c.l.b16 %v2055
    %v2205 = vunpack.c.l.b16 %v2056
    %v2206 = vunpack.c.h.b16 %v2056
    %v2207 = vunpack.c.l.b16 %v2057
    %v2208 = vunpack.c.l.b16 %v2058
    %v2209 = vunpack.c.h.b16 %v2058
    %v2210 = vunpack.c.l.b16 %v2059
    %v2211 = vunpack.c.l.b16 %v2060
    %v2212 = vunpack.c.h.b16 %v2060
    %v2213 = vunpack.c.l.b16 %v2061
    %v2214 = vunpack.c.l.b16 %v2062
    %v2215 = vunpack.c.h.b16 %v2062
    %v2216 = vunpack.c.l.b16 %v2063
    %v2217 = vunpack.c.l.b16 %v2064
    %v2218 = vunpack.c.h.b16 %v2064
    %v2219 = vunpack.c.l.b16 %v2065
    %v2220 = vunpack.c.l.b16 %v2066
    %v2221 = vunpack.c.h.b16 %v2066
    %v2222 = vunpack.c.l.b16 %v2067
    %v2223 = vunpack.c.l.b16 %v2068
    %v2224 = vunpack.c.h.b16 %v2068
    %v2225 = vunpack.c.l.b16 %v2069
    %v2226 = vunpack.c.l.b16 %v2070
    %v2227 = vunpack.c.h.b16 %v2070
    %v2228 = vunpack.c.l.b16 %v2071
    %v2229 = vunpack.c.l.b16 %v2072
    %v2230 = vunpack.c.h.b16 %v2072
    %v2231 = vunpack.c.l.b16 %v2073
    %v2232 = vunpack.c.l.b16 %v2074
    %v2233 = vunpack.c.h.b16 %v2074
    %v2234 = vunpack.c.l.b16 %v2075
    %v2235 = vunpack.c.l.b16 %v2076
    %v2236 = vunpack.c.h.b16 %v2076
    %v2237 = vunpack.c.l.b16 %v2077
    %v2238 = vunpack.c.l.b16 %v2078
    %v2239 = vunpack.c.h.b16 %v2078
    %v2240 = vunpack.c.l.b16 %v2079
    %v2241 = vunpack.c.l.b16 %v2080
    %v2242 = vunpack.c.h.b16 %v2080
    %v2243 = vunpack.c.l.b16 %v2081
    %v2244 = vunpack.c.l.b16 %v2082
    %v2245 = vunpack.c.h.b16 %v2082
    %v2246 = vunpack.c.l.b16 %v2083
    %v2247 = vunpack.c.l.b16 %v2084
    %v2248 = vunpack.c.h.b16 %v2084
    %v2249 = vunpack.c.l.b16 %v2085
    %v2250 = vunpack.c.l.b16 %v2086
    %v2251 = vunpack.c.h.b16 %v2086
    %v2252 = vunpack.c.l.b16 %v2087
    %v2253 = vunpack.c.l.b16 %v2088
    %v2254 = vunpack.c.h.b16 %v2088
    %v2255 = vunpack.c.l.b16 %v2089
    %v2256 = vunpack.c.l.b16 %v2090
    %v2257 = vunpack.c.h.b16 %v2090
    %v2258 = vunpack.c.l.b16 %v2091
    %v2259 = vunpack.c.l.b16 %v2092
    %v2260 = vunpack.c.h.b16 %v2092
    %v2261 = vunpack.c.l.b16 %v2093
    %v2262 = vpack.c.b16 %v2169, %v2166
    %v2263 = vpack.c.b16 %v2170, %v2167
    %v2264 = vpack.c.b16 %v2171, %v2168
    %v2265 = vpack.c.b16 %v2175, %v2172
    %v2266 = vpack.c.b16 %v2176, %v2173
    %v2267 = vpack.c.b16 %v2177, %v2174
    %v2268 = vpack.c.b16 %v2181, %v2178
    %v2269 = vpack.c.b16 %v2182, %v2179
    %v2270 = vpack.c.b16 %v2183, %v2180
    %v2271 = vpack.c.b16 %v2187, %v2184
    %v2272 = vpack.c.b16 %v2188, %v2185
    %v2273 = vpack.c.b16 %v2189, %v2186
    %v2274 = vpack.c.b16 %v2193, %v2190
    %v2275 = vpack.c.b16 %v2194, %v2191
    %v2276 = vpack.c.b16 %v2195, %v2192
    %v2277 = vpack.c.b16 %v2199, %v2196
    %v2278 = vpack.c.b16 %v2200, %v2197
    %v2279 = vpack.c.b16 %v2201, %v2198
    %v2280 = vpack.c.b16 %v2205, %v2202
    %v2281 = vpack.c.b16 %v2206, %v2203
    %v2282 = vpack.c.b16 %v2207, %v2204
    %v2283 = vpack.c.b16 %v2211, %v2208
    %v2284 = vpack.c.b16 %v2212, %v2209
    %v2285 = vpack.c.b16 %v2213, %v2210
    %v2286 = vpack.c.b16 %v2217, %v2214
    %v2287 = vpack.c.b16 %v2218, %v2215
    %v2288 = vpack.c.b16 %v2219, %v2216
    %v2289 = vpack.c.b16 %v2223, %v2220
    %v2290 = vpack.c.b16 %v2224, %v2221
    %v2291 = vpack.c.b16 %v2225, %v2222
    %v2292 = vpack.c.b16 %v2229, %v2226
    %v2293 = vpack.c.b16 %v2230, %v2227
    %v2294 = vpack.c.b16 %v2231, %v2228
    %v2295 = vpack.c.b16 %v2235, %v2232
    %v2296 = vpack.c.b16 %v2236, %v2233
    %v2297 = vpack.c.b16 %v2237, %v2234
    %v2298 = vpack.c.b16 %v2241, %v2238
    %v2299 = vpack.c.b16 %v2242, %v2239
    %v2300 = vpack.c.b16 %v2243, %v2240
    %v2301 = vpack.c.b16 %v2247, %v2244
    %v2302 = vpack.c.b16 %v2248, %v2245
    %v2303 = vpack.c.b16 %v2249, %v2246
    %v2304 = vpack.c.b16 %v2253, %v2250
    %v2305 = vpack.c.b16 %v2254, %v2251
    %v2306 = vpack.c.b16 %v2255, %v2252
    %v2307 = vpack.c.b16 %v2259, %v2256
    %v2308 = vpack.c.b16 %v2260, %v2257
    %v2309 = vpack.c.b16 %v2261, %v2258
    %2358 = vmatpush.bf16.msra.mxu0 %v2283
    %2359 = vmatpush.bf16.msra.mxu0 %v2280
    %2360 = vmatpush.bf16.msra.mxu0 %v2277
    %2361 = vmatpush.bf16.msra.mxu0 %v2274
    %2362 = vmatpush.bf16.msra.mxu0 %v2271
    %2363 = vmatpush.bf16.msra.mxu0 %v2268
    %2364 = vmatpush.bf16.msra.mxu0 %v2265
    %2365 = vmatpush.bf16.msra.mxu0 %v2262
    %2366 = vmatmul.bf16.gmra.mxu0 %v2028
    %v2367 = vpop.f32.mrf.mxu0
    %v2368 = vadd.f32 %v2096, %v2367
    %v2369 = vpop.f32.mrf.mxu0
    %2370 = vdwg.mxu0
    %2371 = vmatpush.bf16.msra.mxu0 %v2307
    %2372 = vmatpush.bf16.msra.mxu0 %v2304
    %2373 = vmatpush.bf16.msra.mxu0 %v2301
    %2374 = vmatpush.bf16.msra.mxu0 %v2298
    %2375 = vmatpush.bf16.msra.mxu0 %v2295
    %2376 = vmatpush.bf16.msra.mxu0 %v2292
    %2377 = vmatpush.bf16.msra.mxu0 %v2289
    %2378 = vmatpush.bf16.msra.mxu0 %v2286
    %2379 = vmatmul.bf16.gmra.mxu0 %v2029
    %v2380 = vpop.f32.mrf.mxu0
    %v2381 = vadd.f32 %v2368, %v2380
    %v2382 = vpop.f32.mrf.mxu0
    %2383 = vdwg.mxu0
    %2384 = vmatpush.bf16.msra.mxu0 %v2284
    %2385 = vmatpush.bf16.msra.mxu0 %v2281
    %2386 = vmatpush.bf16.msra.mxu0 %v2278
    %2387 = vmatpush.bf16.msra.mxu0 %v2275
    %2388 = vmatpush.bf16.msra.mxu0 %v2272
    %2389 = vmatpush.bf16.msra.mxu0 %v2269
    %2390 = vmatpush.bf16.msra.mxu0 %v2266
    %2391 = vmatpush.bf16.msra.mxu0 %v2263
    %2392 = vmatmul.bf16.gmra.mxu0 %v2028
    %v2393 = vpop.f32.mrf.mxu0
    %v2394 = vadd.f32 %v2097, %v2393
    %v2395 = vpop.f32.mrf.mxu0
    %2396 = vdwg.mxu0
    %2397 = vmatpush.bf16.msra.mxu0 %v2308
    %2398 = vmatpush.bf16.msra.mxu0 %v2305
    %2399 = vmatpush.bf16.msra.mxu0 %v2302
    %2400 = vmatpush.bf16.msra.mxu0 %v2299
    %2401 = vmatpush.bf16.msra.mxu0 %v2296
    %2402 = vmatpush.bf16.msra.mxu0 %v2293
    %2403 = vmatpush.bf16.msra.mxu0 %v2290
    %2404 = vmatpush.bf16.msra.mxu0 %v2287
    %2405 = vmatmul.bf16.gmra.mxu0 %v2029
    %v2406 = vpop.f32.mrf.mxu0
    %v2407 = vadd.f32 %v2394, %v2406
    %v2408 = vpop.f32.mrf.mxu0
    %2409 = vdwg.mxu0
    %2410 = vmatpush.bf16.msra.mxu0 %v2285
    %2411 = vmatpush.bf16.msra.mxu0 %v2282
    %2412 = vmatpush.bf16.msra.mxu0 %v2279
    %2413 = vmatpush.bf16.msra.mxu0 %v2276
    %2414 = vmatpush.bf16.msra.mxu0 %v2273
    %2415 = vmatpush.bf16.msra.mxu0 %v2270
    %2416 = vmatpush.bf16.msra.mxu0 %v2267
    %2417 = vmatpush.bf16.msra.mxu0 %v2264
    %2418 = vmatmul.bf16.gmra.mxu0 %v2028
    %v2419 = vpop.f32.mrf.mxu0
    %v2420 = vadd.f32 %v2098, %v2419
    %v2421 = vpop.f32.mrf.mxu0
    %2422 = vdwg.mxu0
    %2423 = vmatpush.bf16.msra.mxu0 %v2309
    %2424 = vmatpush.bf16.msra.mxu0 %v2306
    %2425 = vmatpush.bf16.msra.mxu0 %v2303
    %2426 = vmatpush.bf16.msra.mxu0 %v2300
    %2427 = vmatpush.bf16.msra.mxu0 %v2297
    %2428 = vmatpush.bf16.msra.mxu0 %v2294
    %2429 = vmatpush.bf16.msra.mxu0 %v2291
    %2430 = vmatpush.bf16.msra.mxu0 %v2288
    %2431 = vmatmul.bf16.gmra.mxu0 %v2029
    %v2432 = vpop.f32.mrf.mxu0
    %v2433 = vadd.f32 %v2420, %v2432
    %v2434 = vpop.f32.mrf.mxu0
    %2435 = vdwg.mxu0
    %2436 = vst [vmem:[#allocation19] sm:$0xff] %v2381
    %2437 = vst [vmem:[#allocation19 + $0x8] sm:$0xff] %v2407
    %2438 = vst.msk [vmem:[#allocation19 + $0x10] sm:$0xff] %vm470, %v2433
    // Predicated region
    $region126: #{autoencoder_forward.1} parent=1 // pred_check
      _
    $region127: #{autoencoder_forward.1} parent=1 // pred_check_branch
      %2440 = sbr.rel (0) target = $region129
    $region128: #{autoencoder_forward.1} parent=1 // pred_region
      %2442 = vsyncadd [#allocation4], 0
      %s2444 = sshll.u32 [#allocation19], 4
      %s2445 = int_to_ptr.vmem [resolvable:$true] %s2444
      %s2446 = sshll.u32 %s21, 4
      %s2447 = int_to_ptr.hbm [resolvable:$true] %s2446
      %2449 = dma.vmem_to_hbm [thread:$0]  %s2445, 384, %s2447, [#allocation4]
    $region129: #{autoencoder_forward.1} parent=1 // pred_fallthru
      _
    // Predicated region
    $region130: #{autoencoder_forward.1} parent=1 // pred_check
      _
    $region131: #{autoencoder_forward.1} parent=1 // pred_check_branch
      %2451 = sbr.rel (0) target = $region133
    $region132: #{autoencoder_forward.1} parent=1 // pred_region
      %2453 = dma.done [#allocation4], 384
    $region133: #{autoencoder_forward.1} parent=1 // pred_fallthru
      _
    %2454 = vsyncpa [#allocation3], 1
    %2455 = vsyncpa [#allocation6], 1
    %2456 = vsyncpa [#allocation9], 1
    %2457 = vsyncpa [#allocation12], 1
    %2458 = vsyncpa [#allocation15], 1
    %2459 = vsyncpa [#allocation18], 1
    %2460 = vsyncpa [#allocation4], 1

</llo_original>
